<compile_context>
chip_gen: v7x
topology: tpu7x:2x2x1
jax: 0.10.0
libtpu: 0.0.40
codegen_flags: <defaults>
</compile_context>

<pallas_src>
import functools

import jax
import jax.numpy as jnp
from jax.experimental import pallas as pl
from jax.experimental.pallas import tpu as pltpu


# ----------------------------------------------------------------------------
# small helpers
# ----------------------------------------------------------------------------
def _round_up(x, m):
    return (x + m - 1) // m * m


def _pad_to(a, shape):
    pads = [(0, t - s) for s, t in zip(a.shape, shape)]
    if all(p == (0, 0) for p in pads):
        return a
    return jnp.pad(a, pads)


def _masked_layer_norm(y, gamma, beta, d_real, eps=1e-6):
    """LayerNorm over the last axis using only the first `d_real` lanes.

    Padding lanes of `y`, `gamma`, `beta` are exactly zero by construction, so
    the padded output lanes stay zero and are sliced off in the wrapper.
    """
    d_pad = y.shape[-1]
    inv_n = 1.0 / d_real
    if d_real == d_pad:
        mu = jnp.sum(y, axis=-1, keepdims=True) * inv_n
        yc = y - mu
    else:
        col = jax.lax.broadcasted_iota(jnp.int32, y.shape, y.ndim - 1)
        valid = col < d_real
        mu = jnp.sum(jnp.where(valid, y, 0.0), axis=-1, keepdims=True) * inv_n
        yc = jnp.where(valid, y - mu, 0.0)
    var = jnp.sum(yc * yc, axis=-1, keepdims=True) * inv_n
    return yc * jax.lax.rsqrt(var + eps) * gamma + beta


_BUFFERED1_OK = None


def _buffered1_supported():
    """One-time capability probe: can resident constants be single-buffered?"""
    global _BUFFERED1_OK
    if _BUFFERED1_OK is None:
        def _k(x_ref, o_ref):
            o_ref[...] = x_ref[...] + 1.0
        try:
            r = pl.pallas_call(
                _k,
                out_shape=jax.ShapeDtypeStruct((8, 128), jnp.float32),
                grid=(1,),
                in_specs=[pl.BlockSpec((8, 128), lambda i: (0, 0),
                                       pipeline_mode=pl.Buffered(1))],
                out_specs=pl.BlockSpec((8, 128), lambda i: (0, 0)),
            )(jnp.zeros((8, 128), jnp.float32))
            jax.block_until_ready(r)
            _BUFFERED1_OK = True
        except Exception:
            _BUFFERED1_OK = False
    return _BUFFERED1_OK


def _vmem_limit_bytes():
    """Generation-aware VMEM limit: v5e/v6e (128 MiB) get more than v7x (64 MiB)."""
    cap = 64 * 1024 * 1024  # conservative default (v7x physical per-TC)
    try:
        info = pltpu.get_tpu_info()
        cap = int(getattr(info, "vmem_capacity_bytes", cap) or cap)
    except Exception:
        pass
    return int(min(cap * 3 // 4, 112 * 1024 * 1024))


def _pick_query_tile(s, tq_max=256):
    if s <= tq_max:
        return s
    for t in (256, 128, 64, 32, 16, 8):
        if t <= tq_max and s % t == 0:
            return t
    # TODO(synk): ragged query tiles (pad + key mask) not implemented.
    return s


# ----------------------------------------------------------------------------
# fused decoder-layer kernel
# ----------------------------------------------------------------------------
def _decoder_layer_kernel(*refs, n_head, d_k, d_v, d_real, kp, vp, n_qt,
                          has_mask, compute_dtype):
    idx = 0
    x_q_ref = refs[idx]; idx += 1                 # (1, tq, Dp) f32 query rows
    if n_qt > 1:
        x_kv_ref = refs[idx]; idx += 1            # (1, S, Dp) f32 full sequence
    else:
        x_kv_ref = x_q_ref                        # single tile covers all rows
    mask_ref = None
    if has_mask:
        mask_ref = refs[idx]; idx += 1            # (1, tq, S) int32, !=0 blocked
    (wqkv_ref, wo_ref, ln1g_ref, ln1b_ref, w1_ref, b1_ref, w2_ref, b2_ref,
     ln2g_ref, ln2b_ref, o_ref) = refs[idx:]

    f32 = jnp.float32
    x_q = x_q_ref[0]                              # (tq, Dp) f32, pad lanes zero
    tq = x_q.shape[0]
    x_q_c = x_q.astype(compute_dtype)
    inv_temp = 1.0 / float(d_k) ** 0.5

    # ---- fused Q|K|V projection (single resident bf16 weight) ----
    if n_qt == 1:
        qkv = jnp.dot(x_q_c, wqkv_ref[...], preferred_element_type=f32)
        q_all = qkv[:, :kp]
        k_all = qkv[:, kp:2 * kp]
        v_all = qkv[:, 2 * kp:]
    else:
        x_kv_c = x_kv_ref[0].astype(compute_dtype)
        kv = jnp.dot(x_kv_c, wqkv_ref[:, kp:], preferred_element_type=f32)
        k_all = kv[:, :kp]
        v_all = kv[:, kp:]
        q_all = jnp.dot(x_q_c, wqkv_ref[:, :kp], preferred_element_type=f32)

    # ---- additive mask bias, hoisted out of the head loop ----
    bias = None
    if has_mask:
        bias = jnp.where(mask_ref[0] != 0, -1e9, 0.0).astype(f32)   # (tq, S)

    # ---- per-head attention; contexts gathered for one wide wo matmul ----
    # TODO(synk): for large d_k/d_v, batch heads via dot_general batch dims
    #             instead of a python loop over lane slices.
    ctx_parts = []
    for h in range(n_head):
        q_h = (q_all[:, h * d_k:(h + 1) * d_k] * inv_temp).astype(compute_dtype)
        k_h = k_all[:, h * d_k:(h + 1) * d_k].astype(compute_dtype)
        v_h = v_all[:, h * d_v:(h + 1) * d_v].astype(compute_dtype)
        scores = jax.lax.dot_general(q_h, k_h, (((1,), (1,)), ((), ())),
                                     preferred_element_type=f32)     # (tq, S)
        if bias is not None:
            scores = scores + bias
        m = jnp.max(scores, axis=-1, keepdims=True)
        p = jnp.exp(scores - m)
        attn = p * pl.reciprocal(jnp.sum(p, axis=-1, keepdims=True), approx=True)
        # TODO(synk): attention dropout (p=0.1) is identity in eval mode.
        ctx_parts.append(jnp.dot(attn.astype(compute_dtype), v_h,
                                 preferred_element_type=f32))        # (tq, d_v)
    hv = n_head * d_v
    if vp > hv:
        ctx_parts.append(jnp.zeros((tq, vp - hv), f32))
    ctx = jnp.concatenate(ctx_parts, axis=-1).astype(compute_dtype)  # (tq, Vp)

    # single output projection (contraction over all heads at once)
    proj = jnp.dot(ctx, wo_ref[...], preferred_element_type=f32)     # (tq, Dp)
    # TODO(synk): fc dropout (p=0.1) is identity in eval mode.
    y1 = _masked_layer_norm(proj + x_q, ln1g_ref[...], ln1b_ref[...], d_real)

    # ---- position-wise FFN fused onto the same tile (no HBM round trip) ----
    hmid = jnp.dot(y1.astype(compute_dtype), w1_ref[...],
                   preferred_element_type=f32) + b1_ref[...]
    hmid = jnp.maximum(hmid, 0.0)                                    # ReLU (f32)
    y2 = jnp.dot(hmid.astype(compute_dtype), w2_ref[...],
                 preferred_element_type=f32) + b2_ref[...]
    # TODO(synk): ffn dropout (p=0.1) is identity in eval mode.
    o_ref[0] = _masked_layer_norm(y2 + y1, ln2g_ref[...], ln2b_ref[...],
                                  d_real).astype(o_ref.dtype)


# ----------------------------------------------------------------------------
# parameter preparation (done once, not per forward call)
# ----------------------------------------------------------------------------
def prepare_decoder_params(params, n_head, compute_dtype=jnp.bfloat16):
    f32 = jnp.float32
    d_model, hdk = params["wq"].shape
    hdv = params["wv"].shape[1]
    d_inner = params["w1"].shape[1]
    d_k, d_v = hdk // n_head, hdv // n_head

    d_pad = _round_up(d_model, 128)
    kp = _round_up(hdk, 128)
    vp = _round_up(hdv, 128)
    h_pad = _round_up(d_inner, 128)

    wq = _pad_to(params["wq"].astype(f32), (d_pad, kp))
    wk = _pad_to(params["wk"].astype(f32), (d_pad, kp))
    wv = _pad_to(params["wv"].astype(f32), (d_pad, vp))
    arrays = dict(
        wqkv=jnp.concatenate([wq, wk, wv], axis=1).astype(compute_dtype),
        wo=_pad_to(params["wo"].astype(f32), (vp, d_pad)).astype(compute_dtype),
        ln1_g=_pad_to(params["ln1_g"].astype(f32).reshape(1, -1), (1, d_pad)),
        ln1_b=_pad_to(params["ln1_b"].astype(f32).reshape(1, -1), (1, d_pad)),
        w1=_pad_to(params["w1"].astype(f32), (d_pad, h_pad)).astype(compute_dtype),
        b1=_pad_to(params["b1"].astype(f32).reshape(1, -1), (1, h_pad)),
        w2=_pad_to(params["w2"].astype(f32), (h_pad, d_pad)).astype(compute_dtype),
        b2=_pad_to(params["b2"].astype(f32).reshape(1, -1), (1, d_pad)),
        ln2_g=_pad_to(params["ln2_g"].astype(f32).reshape(1, -1), (1, d_pad)),
        ln2_b=_pad_to(params["ln2_b"].astype(f32).reshape(1, -1), (1, d_pad)),
    )
    meta = dict(n_head=n_head, d_k=d_k, d_v=d_v, d_model=d_model,
                d_inner=d_inner, d_pad=d_pad, kp=kp, vp=vp, h_pad=h_pad,
                compute_dtype=compute_dtype)
    return dict(arrays=arrays, meta=meta)


# ----------------------------------------------------------------------------
# wrapper
# ----------------------------------------------------------------------------
def transformer_decoder_layer(x, prep, mask=None):
    """Eval-mode TransformerDecoderLayer forward as one fused Pallas kernel."""
    meta, arrs = prep["meta"], prep["arrays"]
    f32 = jnp.float32
    B, S, d_model = x.shape
    assert d_model == meta["d_model"]
    d_pad, kp, vp, h_pad = meta["d_pad"], meta["kp"], meta["vp"], meta["h_pad"]
    n_head, d_k, d_v = meta["n_head"], meta["d_k"], meta["d_v"]
    compute_dtype = meta["compute_dtype"]

    x_p = _pad_to(x.astype(f32), (B, S, d_pad))       # lane-dense activations
    tq = _pick_query_tile(S)
    n_qt = S // tq
    has_mask = mask is not None
    single_buffer = _buffered1_supported()

    def const_spec(shape):
        nd = len(shape)
        imap = lambda *_: (0,) * nd
        if single_buffer:
            return pl.BlockSpec(shape, imap, pipeline_mode=pl.Buffered(1))
        return pl.BlockSpec(shape, imap)

    in_specs = [pl.BlockSpec((1, tq, d_pad), lambda b, q: (b, q, 0))]   # x (q rows)
    inputs = [x_p]
    if n_qt > 1:
        in_specs.append(pl.BlockSpec((1, S, d_pad), lambda b, q: (b, 0, 0)))
        inputs.append(x_p)                                              # x (kv rows)
    if has_mask:
        m = jnp.asarray(mask)
        if m.ndim == 2:
            m = m[None]
        if m.ndim == 4:            # torch-style (B, 1, S, S)
            m = m[:, 0]
        m = jnp.broadcast_to(m, (B, S, S))
        mask_i = (m != 0).astype(jnp.int32)
        in_specs.append(pl.BlockSpec((1, tq, S), lambda b, q: (b, q, 0)))
        inputs.append(mask_i)

    const_shapes = [
        (d_pad, 2 * kp + vp),        # wqkv
        (vp, d_pad),                 # wo
        (1, d_pad), (1, d_pad),      # ln1 gamma / beta
        (d_pad, h_pad), (1, h_pad),  # w1, b1
        (h_pad, d_pad), (1, d_pad),  # w2, b2
        (1, d_pad), (1, d_pad),      # ln2 gamma / beta
    ]
    in_specs += [const_spec(s) for s in const_shapes]
    inputs += [arrs["wqkv"], arrs["wo"], arrs["ln1_g"], arrs["ln1_b"],
               arrs["w1"], arrs["b1"], arrs["w2"], arrs["b2"],
               arrs["ln2_g"], arrs["ln2_b"]]

    # Advisory cost estimate for the XLA scheduler around the custom call.
    flops = (2 * B * n_qt * S * d_pad * (2 * kp + vp)      # QKV projection
             + 2 * B * S * S * n_head * (d_k + d_v)        # scores + ctx
             + 2 * B * S * vp * d_pad                      # output projection
             + 4 * B * S * d_pad * h_pad)                  # FFN
    w_itemsize = jnp.dtype(compute_dtype).itemsize
    weight_bytes = ((d_pad * (2 * kp + vp) + vp * d_pad + 2 * d_pad * h_pad)
                    * w_itemsize + (5 * d_pad + h_pad) * 4)
    x_reads = 1 if n_qt == 1 else (1 + n_qt)
    bytes_accessed = (B * S * d_pad * 4 * (x_reads + 1)
                      + (B * S * S * 4 if has_mask else 0)
                      + weight_bytes)
    cost = pl.CostEstimate(flops=int(flops),
                           transcendentals=int(B * n_head * S * S + 4 * B * S),
                           bytes_accessed=int(bytes_accessed))

    kernel = functools.partial(
        _decoder_layer_kernel, n_head=n_head, d_k=d_k, d_v=d_v,
        d_real=d_model, kp=kp, vp=vp, n_qt=n_qt, has_mask=has_mask,
        compute_dtype=compute_dtype)

    out = pl.pallas_call(
        kernel,
        out_shape=jax.ShapeDtypeStruct((B, S, d_pad), f32),
        grid=(B, n_qt),
        in_specs=in_specs,
        out_specs=pl.BlockSpec((1, tq, d_pad), lambda b, q: (b, q, 0)),
        compiler_params=pltpu.CompilerParams(
            dimension_semantics=("parallel", "parallel"),
            vmem_limit_bytes=_vmem_limit_bytes()),
        cost_estimate=cost,
    )(*inputs)

    return out[:, :, :d_model].astype(x.dtype)


# ----------------------------------------------------------------------------
# pure-JAX reference (mirrors the PyTorch forward; optional matched precision)
# ----------------------------------------------------------------------------
def reference_decoder_layer(x, params, mask, *, n_head,
                            compute_dtype=jnp.float32):
    f32 = jnp.float32
    c = lambda a: a.astype(compute_dtype)
    B, S, _ = x.shape
    d_k = params["wq"].shape[1] // n_head
    d_v = params["wv"].shape[1] // n_head

    def ln(y, g, b, eps=1e-6):
        mu = jnp.mean(y, axis=-1, keepdims=True)
        var = jnp.mean((y - mu) ** 2, axis=-1, keepdims=True)
        return (y - mu) * jax.lax.rsqrt(var + eps) * g + b

    x = x.astype(f32)
    q = jnp.dot(c(x), c(params["wq"]), preferred_element_type=f32)
    k = jnp.dot(c(x), c(params["wk"]), preferred_element_type=f32)
    v = jnp.dot(c(x), c(params["wv"]), preferred_element_type=f32)
    q = q.reshape(B, S, n_head, d_k).transpose(0, 2, 1, 3)
    k = k.reshape(B, S, n_head, d_k).transpose(0, 2, 1, 3)
    v = v.reshape(B, S, n_head, d_v).transpose(0, 2, 1, 3)

    inv_temp = 1.0 / float(d_k) ** 0.5
    scores = jnp.einsum("bhqd,bhkd->bhqk", c(q * inv_temp), c(k),
                        preferred_element_type=f32)
    if mask is not None:
        m = jnp.asarray(mask)
        if m.ndim == 3:
            m = m[:, None]
        scores = jnp.where(m != 0, -1e9, scores)
    scores = scores - jnp.max(scores, axis=-1, keepdims=True)
    p = jnp.exp(scores)
    attn = p / jnp.sum(p, axis=-1, keepdims=True)

    ctx = jnp.einsum("bhqk,bhkd->bhqd", c(attn), c(v), preferred_element_type=f32)
    ctx = ctx.transpose(0, 2, 1, 3).reshape(B, S, n_head * d_v)
    y = jnp.dot(c(ctx), c(params["wo"]), preferred_element_type=f32) + x
    y = ln(y, params["ln1_g"], params["ln1_b"])

    h = jnp.maximum(
        jnp.dot(c(y), c(params["w1"]), preferred_element_type=f32) + params["b1"], 0.0)
    z = jnp.dot(c(h), c(params["w2"]), preferred_element_type=f32) + params["b2"] + y
    return ln(z, params["ln2_g"], params["ln2_b"])


# ----------------------------------------------------------------------------
# test
# ----------------------------------------------------------------------------
if __name__ == "__main__":
    B, S = 2, 8
    d_model, d_inner = 32, 64
    n_head, d_k, d_v = 2, 8, 8
    f32 = jnp.float32

    key = jax.random.PRNGKey(0)
    keys = jax.random.split(key, 13)
    x = jax.random.normal(keys[0], (B, S, d_model), dtype=f32)

    def lin(k, fan_in, shape):
        return jax.random.normal(k, shape, dtype=f32) * (1.0 / fan_in ** 0.5)

    # (in_features, out_features) layout; transpose torch nn.Linear.weight.
    params = {
        "wq": lin(keys[1], d_model, (d_model, n_head * d_k)),
        "wk": lin(keys[2], d_model, (d_model, n_head * d_k)),
        "wv": lin(keys[3], d_model, (d_model, n_head * d_v)),
        "wo": lin(keys[4], n_head * d_v, (n_head * d_v, d_model)),
        "ln1_g": 1.0 + 0.1 * jax.random.normal(keys[5], (d_model,), dtype=f32),
        "ln1_b": 0.1 * jax.random.normal(keys[6], (d_model,), dtype=f32),
        "w1": lin(keys[7], d_model, (d_model, d_inner)),
        "b1": 0.02 * jax.random.normal(keys[8], (d_inner,), dtype=f32),
        "w2": lin(keys[9], d_inner, (d_inner, d_model)),
        "b2": 0.02 * jax.random.normal(keys[10], (d_model,), dtype=f32),
        "ln2_g": 1.0 + 0.1 * jax.random.normal(keys[11], (d_model,), dtype=f32),
        "ln2_b": 0.1 * jax.random.normal(keys[12], (d_model,), dtype=f32),
    }

    # causal decoder mask: NONZERO entries are blocked (masked_fill(mask != 0)).
    causal = jnp.triu(jnp.ones((S, S), jnp.int32), k=1)
    attn_mask = jnp.broadcast_to(causal, (B, S, S))

    prepared = prepare_decoder_params(params, n_head, compute_dtype=jnp.bfloat16)
    out = transformer_decoder_layer(x, prepared, attn_mask)
    out = jax.block_until_ready(out)
    assert out.shape == (B, S, d_model)

    # matched-precision reference (same bf16 matmul operands) -> tight check
    ref_matched = reference_decoder_layer(x, params, attn_mask, n_head=n_head,
                                          compute_dtype=jnp.bfloat16)
    # full-f32 reference (the PyTorch eval-mode math) -> loose sanity check
    ref_f32 = reference_decoder_layer(x, params, attn_mask, n_head=n_head,
                                      compute_dtype=jnp.float32)

    err = float(jnp.max(jnp.abs(out - ref_matched)))
    assert jnp.allclose(out, ref_matched, atol=2e-2, rtol=2e-2), f"max|diff|={err}"
    assert jnp.allclose(out, ref_f32, atol=1e-1, rtol=1e-1)

    # also exercise the mask=None path (no (B,S,S) mask materialized)
    out_nomask = jax.block_until_ready(transformer_decoder_layer(x, prepared, None))
    ref_nomask = reference_decoder_layer(x, params, None, n_head=n_head,
                                         compute_dtype=jnp.bfloat16)
    assert jnp.allclose(out_nomask, ref_nomask, atol=2e-2, rtol=2e-2)

    print("KERNEL_OK")
</pallas_src>

<mosaic_0001>
module attributes {stable_mosaic.version = 11 : i64} {
  func.func @_k(%arg0: i32, %arg1: memref<8x128xf32, #tpu.memory_space<vmem>>, %arg2: memref<8x128xf32, #tpu.memory_space<vmem>>) attributes {dimension_semantics = [#tpu.dimension_semantics<arbitrary>], iteration_bounds = array<i64: 1>, scalar_prefetch = 0 : i64, scratch_operands = 0 : i64, tpu.core_type = #tpu.core_type<tc>, window_params = [{pipeline_mode = #tpu.pipeline_mode<synchronous>, transform_indices = @transform_0, window_bounds = array<i64: 8, 128>}, {pipeline_mode = #tpu.pipeline_mode<synchronous>, transform_indices = @transform_1, window_bounds = array<i64: 8, 128>}]} {
    %c0 = arith.constant 0 : index
    %c0_0 = arith.constant 0 : index
    %0 = vector.load %arg1[%c0, %c0_0] : memref<8x128xf32, #tpu.memory_space<vmem>>, vector<8x128xf32>
    %cst = arith.constant 1.000000e+00 : f32
    %1 = vector.broadcast %cst : f32 to vector<8x128xf32>
    %2 = arith.addf %0, %1 : vector<8x128xf32>
    %c0_1 = arith.constant 0 : index
    %c0_2 = arith.constant 0 : index
    %3 = vector.load %arg2[%c0_1, %c0_2] : memref<8x128xf32, #tpu.memory_space<vmem>>, vector<8x128xf32>
    tpu.vector_store %arg2[%c0_1, %c0_2], %2 {strides = array<i32>} : memref<8x128xf32, #tpu.memory_space<vmem>>, vector<8x128xf32>,
    return
  }
  func.func @transform_0(%arg0: i32) -> (i32, i32) {
    %c0_i32 = arith.constant 0 : i32
    %c0_i32_0 = arith.constant 0 : i32
    %c0_i32_1 = arith.constant 0 : i32
    return %c0_i32, %c0_i32_0 : i32, i32
  }
  func.func @transform_1(%arg0: i32) -> (i32, i32) {
    %c0_i32 = arith.constant 0 : i32
    %c0_i32_0 = arith.constant 0 : i32
    %c0_i32_1 = arith.constant 0 : i32
    return %c0_i32, %c0_i32_0 : i32, i32
  }
}

module attributes {stable_mosaic.version = 11 : i64} {
  func.func @_decoder_layer_kernel(%arg0: i32, %arg1: i32, %arg2: memref<1x8x128xf32, #tpu.memory_space<vmem>>, %arg3: memref<1x8x8xi32, #tpu.memory_space<vmem>>, %arg4: memref<128x384xbf16, #tpu.memory_space<vmem>>, %arg5: memref<128x128xbf16, #tpu.memory_space<vmem>>, %arg6: memref<1x128xf32, #tpu.memory_space<vmem>>, %arg7: memref<1x128xf32, #tpu.memory_space<vmem>>, %arg8: memref<128x128xbf16, #tpu.memory_space<vmem>>, %arg9: memref<1x128xf32, #tpu.memory_space<vmem>>, %arg10: memref<128x128xbf16, #tpu.memory_space<vmem>>, %arg11: memref<1x128xf32, #tpu.memory_space<vmem>>, %arg12: memref<1x128xf32, #tpu.memory_space<vmem>>, %arg13: memref<1x128xf32, #tpu.memory_space<vmem>>, %arg14: memref<1x8x128xf32, #tpu.memory_space<vmem>>) attributes {dimension_semantics = [#tpu.dimension_semantics<parallel>, #tpu.dimension_semantics<parallel>], iteration_bounds = array<i64: 2, 1>, scalar_prefetch = 0 : i64, scratch_operands = 0 : i64, tpu.core_type = #tpu.core_type<tc>, window_params = [{transform_indices = @transform_0, window_bounds = array<i64: 1, 8, 128>}, {transform_indices = @transform_1, window_bounds = array<i64: 1, 8, 8>}, {pipeline_mode = #tpu.pipeline_mode<synchronous>, transform_indices = @transform_2, window_bounds = array<i64: 128, 384>}, {pipeline_mode = #tpu.pipeline_mode<synchronous>, transform_indices = @transform_3, window_bounds = array<i64: 128, 128>}, {pipeline_mode = #tpu.pipeline_mode<synchronous>, transform_indices = @transform_4, window_bounds = array<i64: 1, 128>}, {pipeline_mode = #tpu.pipeline_mode<synchronous>, transform_indices = @transform_5, window_bounds = array<i64: 1, 128>}, {pipeline_mode = #tpu.pipeline_mode<synchronous>, transform_indices = @transform_6, window_bounds = array<i64: 128, 128>}, {pipeline_mode = #tpu.pipeline_mode<synchronous>, transform_indices = @transform_7, window_bounds = array<i64: 1, 128>}, {pipeline_mode = #tpu.pipeline_mode<synchronous>, transform_indices = @transform_8, window_bounds = array<i64: 128, 128>}, {pipeline_mode = #tpu.pipeline_mode<synchronous>, transform_indices = @transform_9, window_bounds = array<i64: 1, 128>}, {pipeline_mode = #tpu.pipeline_mode<synchronous>, transform_indices = @transform_10, window_bounds = array<i64: 1, 128>}, {pipeline_mode = #tpu.pipeline_mode<synchronous>, transform_indices = @transform_11, window_bounds = array<i64: 1, 128>}, {transform_indices = @transform_12, window_bounds = array<i64: 1, 8, 128>}]} {
    %c0 = arith.constant 0 : index
    %c0_0 = arith.constant 0 : index
    %c0_1 = arith.constant 0 : index
    %0 = vector.load %arg2[%c0, %c0_0, %c0_1] : memref<1x8x128xf32, #tpu.memory_space<vmem>>, vector<1x8x128xf32>
    %1 = vector.shape_cast %0 : vector<1x8x128xf32> to vector<8x128xf32>
    %2 = arith.truncf %1 : vector<8x128xf32> to vector<8x128xbf16>
    %c0_2 = arith.constant 0 : index
    %c0_3 = arith.constant 0 : index
    %3 = vector.load %arg4[%c0_2, %c0_3] : memref<128x384xbf16, #tpu.memory_space<vmem>>, vector<128x384xbf16>
    %cst = arith.constant dense<0.000000e+00> : vector<8x384xf32>
    %4 = tpu.matmul %2, %3, %cst {dimension_numbers = #tpu.dot_dimension_numbers<[1], [0], [0], [1], [0, 0, 1, 1], [], []>} : vector<8x128xbf16>, vector<128x384xbf16>, vector<8x384xf32> -> vector<8x384xf32>
    %5 = vector.extract_strided_slice %4 {offsets = [0, 0], sizes = [8, 128], strides = [1, 1]} : vector<8x384xf32> to vector<8x128xf32>
    %6 = vector.extract_strided_slice %4 {offsets = [0, 128], sizes = [8, 128], strides = [1, 1]} : vector<8x384xf32> to vector<8x128xf32>
    %7 = vector.extract_strided_slice %4 {offsets = [0, 256], sizes = [8, 128], strides = [1, 1]} : vector<8x384xf32> to vector<8x128xf32>
    %c0_4 = arith.constant 0 : index
    %c0_5 = arith.constant 0 : index
    %c0_6 = arith.constant 0 : index
    %8 = vector.load %arg3[%c0_4, %c0_5, %c0_6] : memref<1x8x8xi32, #tpu.memory_space<vmem>>, vector<1x8x8xi32>
    %9 = vector.shape_cast %8 : vector<1x8x8xi32> to vector<8x8xi32>
    %c0_i32 = arith.constant 0 : i32
    %10 = vector.broadcast %c0_i32 : i32 to vector<8x8xi32>
    %11 = arith.cmpi ne, %9, %10 : vector<8x8xi32>
    %cst_7 = arith.constant -1.000000e+09 : f32
    %cst_8 = arith.constant 0.000000e+00 : f32
    %12 = vector.broadcast %cst_7 : f32 to vector<8x8xf32>
    %13 = vector.broadcast %cst_8 : f32 to vector<8x8xf32>
    %14 = arith.select %11, %12, %13 : vector<8x8xi1>, vector<8x8xf32>
    %15 = vector.extract_strided_slice %5 {offsets = [0, 0], sizes = [8, 8], strides = [1, 1]} : vector<8x128xf32> to vector<8x8xf32>
    %cst_9 = arith.constant 0.353553385 : f32
    %16 = vector.broadcast %cst_9 : f32 to vector<8x8xf32>
    %17 = arith.mulf %15, %16 : vector<8x8xf32>
    %18 = arith.truncf %17 : vector<8x8xf32> to vector<8x8xbf16>
    %19 = vector.extract_strided_slice %6 {offsets = [0, 0], sizes = [8, 8], strides = [1, 1]} : vector<8x128xf32> to vector<8x8xf32>
    %20 = arith.truncf %19 : vector<8x8xf32> to vector<8x8xbf16>
    %21 = vector.extract_strided_slice %7 {offsets = [0, 0], sizes = [8, 8], strides = [1, 1]} : vector<8x128xf32> to vector<8x8xf32>
    %22 = arith.truncf %21 : vector<8x8xf32> to vector<8x8xbf16>
    %cst_10 = arith.constant dense<0.000000e+00> : vector<8x8xf32>
    %23 = tpu.matmul %18, %20, %cst_10 {dimension_numbers = #tpu.dot_dimension_numbers<[1], [1], [0], [0], [0, 0, 1, 0], [], []>} : vector<8x8xbf16>, vector<8x8xbf16>, vector<8x8xf32> -> vector<8x8xf32>
    %24 = arith.addf %23, %14 : vector<8x8xf32>
    %cst_11 = arith.constant dense<0xFF800000> : vector<8xf32>
    %25 = vector.multi_reduction <maximumf>, %24, %cst_11 [1] : vector<8x8xf32> to vector<8xf32>
    %26 = vector.shape_cast %25 : vector<8xf32> to vector<8x1xf32>
    %27 = vector.broadcast %26 : vector<8x1xf32> to vector<8x8xf32>
    %28 = arith.subf %24, %27 : vector<8x8xf32>
    %29 = math.exp %28 : vector<8x8xf32>
    %cst_12 = arith.constant dense<0.000000e+00> : vector<8xf32>
    %30 = vector.multi_reduction <add>, %29, %cst_12 [1] : vector<8x8xf32> to vector<8xf32>
    %31 = vector.shape_cast %30 : vector<8xf32> to vector<8x1xf32>
    %32 = tpu.reciprocal %31 {approx = true} : vector<8x1xf32> -> vector<8x1xf32>
    %33 = vector.broadcast %32 : vector<8x1xf32> to vector<8x8xf32>
    %34 = arith.mulf %29, %33 : vector<8x8xf32>
    %35 = arith.truncf %34 : vector<8x8xf32> to vector<8x8xbf16>
    %cst_13 = arith.constant dense<0.000000e+00> : vector<8x8xf32>
    %36 = tpu.matmul %35, %22, %cst_13 {dimension_numbers = #tpu.dot_dimension_numbers<[1], [0], [0], [1], [0, 0, 1, 1], [], []>} : vector<8x8xbf16>, vector<8x8xbf16>, vector<8x8xf32> -> vector<8x8xf32>
    %37 = vector.extract_strided_slice %5 {offsets = [0, 8], sizes = [8, 8], strides = [1, 1]} : vector<8x128xf32> to vector<8x8xf32>
    %cst_14 = arith.constant 0.353553385 : f32
    %38 = vector.broadcast %cst_14 : f32 to vector<8x8xf32>
    %39 = arith.mulf %37, %38 : vector<8x8xf32>
    %40 = arith.truncf %39 : vector<8x8xf32> to vector<8x8xbf16>
    %41 = vector.extract_strided_slice %6 {offsets = [0, 8], sizes = [8, 8], strides = [1, 1]} : vector<8x128xf32> to vector<8x8xf32>
    %42 = arith.truncf %41 : vector<8x8xf32> to vector<8x8xbf16>
    %43 = vector.extract_strided_slice %7 {offsets = [0, 8], sizes = [8, 8], strides = [1, 1]} : vector<8x128xf32> to vector<8x8xf32>
    %44 = arith.truncf %43 : vector<8x8xf32> to vector<8x8xbf16>
    %cst_15 = arith.constant dense<0.000000e+00> : vector<8x8xf32>
    %45 = tpu.matmul %40, %42, %cst_15 {dimension_numbers = #tpu.dot_dimension_numbers<[1], [1], [0], [0], [0, 0, 1, 0], [], []>} : vector<8x8xbf16>, vector<8x8xbf16>, vector<8x8xf32> -> vector<8x8xf32>
    %46 = arith.addf %45, %14 : vector<8x8xf32>
    %cst_16 = arith.constant dense<0xFF800000> : vector<8xf32>
    %47 = vector.multi_reduction <maximumf>, %46, %cst_16 [1] : vector<8x8xf32> to vector<8xf32>
    %48 = vector.shape_cast %47 : vector<8xf32> to vector<8x1xf32>
    %49 = vector.broadcast %48 : vector<8x1xf32> to vector<8x8xf32>
    %50 = arith.subf %46, %49 : vector<8x8xf32>
    %51 = math.exp %50 : vector<8x8xf32>
    %cst_17 = arith.constant dense<0.000000e+00> : vector<8xf32>
    %52 = vector.multi_reduction <add>, %51, %cst_17 [1] : vector<8x8xf32> to vector<8xf32>
    %53 = vector.shape_cast %52 : vector<8xf32> to vector<8x1xf32>
    %54 = tpu.reciprocal %53 {approx = true} : vector<8x1xf32> -> vector<8x1xf32>
    %55 = vector.broadcast %54 : vector<8x1xf32> to vector<8x8xf32>
    %56 = arith.mulf %51, %55 : vector<8x8xf32>
    %57 = arith.truncf %56 : vector<8x8xf32> to vector<8x8xbf16>
    %cst_18 = arith.constant dense<0.000000e+00> : vector<8x8xf32>
    %58 = tpu.matmul %57, %44, %cst_18 {dimension_numbers = #tpu.dot_dimension_numbers<[1], [0], [0], [1], [0, 0, 1, 1], [], []>} : vector<8x8xbf16>, vector<8x8xbf16>, vector<8x8xf32> -> vector<8x8xf32>
    %cst_19 = arith.constant 0.000000e+00 : f32
    %59 = vector.broadcast %cst_19 : f32 to vector<8x112xf32>
    %60 = tpu.concatenate %36, %58, %59 in 1 : vector<8x8xf32>, vector<8x8xf32>, vector<8x112xf32> -> vector<8x128xf32>
    %61 = arith.truncf %60 : vector<8x128xf32> to vector<8x128xbf16>
    %c0_20 = arith.constant 0 : index
    %c0_21 = arith.constant 0 : index
    %62 = vector.load %arg5[%c0_20, %c0_21] : memref<128x128xbf16, #tpu.memory_space<vmem>>, vector<128x128xbf16>
    %cst_22 = arith.constant dense<0.000000e+00> : vector<8x128xf32>
    %63 = tpu.matmul %61, %62, %cst_22 {dimension_numbers = #tpu.dot_dimension_numbers<[1], [0], [0], [1], [0, 0, 1, 1], [], []>} : vector<8x128xbf16>, vector<128x128xbf16>, vector<8x128xf32> -> vector<8x128xf32>
    %64 = arith.addf %63, %1 : vector<8x128xf32>
    %c0_23 = arith.constant 0 : index
    %c0_24 = arith.constant 0 : index
    %65 = vector.load %arg6[%c0_23, %c0_24] : memref<1x128xf32, #tpu.memory_space<vmem>>, vector<1x128xf32>
    %c0_25 = arith.constant 0 : index
    %c0_26 = arith.constant 0 : index
    %66 = vector.load %arg7[%c0_25, %c0_26] : memref<1x128xf32, #tpu.memory_space<vmem>>, vector<1x128xf32>
    %67 = tpu.iota {dimensions = array<i32: 1>} : vector<8x128xi32>
    %c32_i32 = arith.constant 32 : i32
    %68 = vector.broadcast %c32_i32 : i32 to vector<8x128xi32>
    %69 = arith.cmpi slt, %67, %68 : vector<8x128xi32>
    %cst_27 = arith.constant 0.000000e+00 : f32
    %70 = vector.broadcast %cst_27 : f32 to vector<8x128xf32>
    %71 = arith.select %69, %64, %70 : vector<8x128xi1>, vector<8x128xf32>
    %cst_28 = arith.constant dense<0.000000e+00> : vector<8xf32>
    %72 = vector.multi_reduction <add>, %71, %cst_28 [1] : vector<8x128xf32> to vector<8xf32>
    %73 = vector.shape_cast %72 : vector<8xf32> to vector<8x1xf32>
    %cst_29 = arith.constant 3.125000e-02 : f32
    %74 = vector.broadcast %cst_29 : f32 to vector<8x1xf32>
    %75 = arith.mulf %73, %74 : vector<8x1xf32>
    %76 = vector.broadcast %75 : vector<8x1xf32> to vector<8x128xf32>
    %77 = arith.subf %64, %76 : vector<8x128xf32>
    %cst_30 = arith.constant 0.000000e+00 : f32
    %78 = vector.broadcast %cst_30 : f32 to vector<8x128xf32>
    %79 = arith.select %69, %77, %78 : vector<8x128xi1>, vector<8x128xf32>
    %80 = arith.mulf %79, %79 : vector<8x128xf32>
    %cst_31 = arith.constant dense<0.000000e+00> : vector<8xf32>
    %81 = vector.multi_reduction <add>, %80, %cst_31 [1] : vector<8x128xf32> to vector<8xf32>
    %82 = vector.shape_cast %81 : vector<8xf32> to vector<8x1xf32>
    %cst_32 = arith.constant 3.125000e-02 : f32
    %83 = vector.broadcast %cst_32 : f32 to vector<8x1xf32>
    %84 = arith.mulf %82, %83 : vector<8x1xf32>
    %cst_33 = arith.constant 9.99999997E-7 : f32
    %85 = vector.broadcast %cst_33 : f32 to vector<8x1xf32>
    %86 = arith.addf %84, %85 : vector<8x1xf32>
    %87 = math.rsqrt %86 : vector<8x1xf32>
    %88 = vector.broadcast %87 : vector<8x1xf32> to vector<8x128xf32>
    %89 = arith.mulf %79, %88 : vector<8x128xf32>
    %90 = vector.broadcast %65 : vector<1x128xf32> to vector<8x128xf32>
    %91 = arith.mulf %89, %90 : vector<8x128xf32>
    %92 = vector.broadcast %66 : vector<1x128xf32> to vector<8x128xf32>
    %93 = arith.addf %91, %92 : vector<8x128xf32>
    %94 = arith.truncf %93 : vector<8x128xf32> to vector<8x128xbf16>
    %c0_34 = arith.constant 0 : index
    %c0_35 = arith.constant 0 : index
    %95 = vector.load %arg8[%c0_34, %c0_35] : memref<128x128xbf16, #tpu.memory_space<vmem>>, vector<128x128xbf16>
    %cst_36 = arith.constant dense<0.000000e+00> : vector<8x128xf32>
    %96 = tpu.matmul %94, %95, %cst_36 {dimension_numbers = #tpu.dot_dimension_numbers<[1], [0], [0], [1], [0, 0, 1, 1], [], []>} : vector<8x128xbf16>, vector<128x128xbf16>, vector<8x128xf32> -> vector<8x128xf32>
    %c0_37 = arith.constant 0 : index
    %c0_38 = arith.constant 0 : index
    %97 = vector.load %arg9[%c0_37, %c0_38] : memref<1x128xf32, #tpu.memory_space<vmem>>, vector<1x128xf32>
    %98 = vector.broadcast %97 : vector<1x128xf32> to vector<8x128xf32>
    %99 = arith.addf %96, %98 : vector<8x128xf32>
    %cst_39 = arith.constant 0.000000e+00 : f32
    %100 = vector.broadcast %cst_39 : f32 to vector<8x128xf32>
    %101 = arith.maximumf %99, %100 : vector<8x128xf32>
    %102 = arith.truncf %101 : vector<8x128xf32> to vector<8x128xbf16>
    %c0_40 = arith.constant 0 : index
    %c0_41 = arith.constant 0 : index
    %103 = vector.load %arg10[%c0_40, %c0_41] : memref<128x128xbf16, #tpu.memory_space<vmem>>, vector<128x128xbf16>
    %cst_42 = arith.constant dense<0.000000e+00> : vector<8x128xf32>
    %104 = tpu.matmul %102, %103, %cst_42 {dimension_numbers = #tpu.dot_dimension_numbers<[1], [0], [0], [1], [0, 0, 1, 1], [], []>} : vector<8x128xbf16>, vector<128x128xbf16>, vector<8x128xf32> -> vector<8x128xf32>
    %c0_43 = arith.constant 0 : index
    %c0_44 = arith.constant 0 : index
    %105 = vector.load %arg11[%c0_43, %c0_44] : memref<1x128xf32, #tpu.memory_space<vmem>>, vector<1x128xf32>
    %106 = vector.broadcast %105 : vector<1x128xf32> to vector<8x128xf32>
    %107 = arith.addf %104, %106 : vector<8x128xf32>
    %108 = arith.addf %107, %93 : vector<8x128xf32>
    %c0_45 = arith.constant 0 : index
    %c0_46 = arith.constant 0 : index
    %109 = vector.load %arg12[%c0_45, %c0_46] : memref<1x128xf32, #tpu.memory_space<vmem>>, vector<1x128xf32>
    %c0_47 = arith.constant 0 : index
    %c0_48 = arith.constant 0 : index
    %110 = vector.load %arg13[%c0_47, %c0_48] : memref<1x128xf32, #tpu.memory_space<vmem>>, vector<1x128xf32>
    %111 = tpu.iota {dimensions = array<i32: 1>} : vector<8x128xi32>
    %c32_i32_49 = arith.constant 32 : i32
    %112 = vector.broadcast %c32_i32_49 : i32 to vector<8x128xi32>
    %113 = arith.cmpi slt, %111, %112 : vector<8x128xi32>
    %cst_50 = arith.constant 0.000000e+00 : f32
    %114 = vector.broadcast %cst_50 : f32 to vector<8x128xf32>
    %115 = arith.select %113, %108, %114 : vector<8x128xi1>, vector<8x128xf32>
    %cst_51 = arith.constant dense<0.000000e+00> : vector<8xf32>
    %116 = vector.multi_reduction <add>, %115, %cst_51 [1] : vector<8x128xf32> to vector<8xf32>
    %117 = vector.shape_cast %116 : vector<8xf32> to vector<8x1xf32>
    %cst_52 = arith.constant 3.125000e-02 : f32
    %118 = vector.broadcast %cst_52 : f32 to vector<8x1xf32>
    %119 = arith.mulf %117, %118 : vector<8x1xf32>
    %120 = vector.broadcast %119 : vector<8x1xf32> to vector<8x128xf32>
    %121 = arith.subf %108, %120 : vector<8x128xf32>
    %cst_53 = arith.constant 0.000000e+00 : f32
    %122 = vector.broadcast %cst_53 : f32 to vector<8x128xf32>
    %123 = arith.select %113, %121, %122 : vector<8x128xi1>, vector<8x128xf32>
    %124 = arith.mulf %123, %123 : vector<8x128xf32>
    %cst_54 = arith.constant dense<0.000000e+00> : vector<8xf32>
    %125 = vector.multi_reduction <add>, %124, %cst_54 [1] : vector<8x128xf32> to vector<8xf32>
    %126 = vector.shape_cast %125 : vector<8xf32> to vector<8x1xf32>
    %cst_55 = arith.constant 3.125000e-02 : f32
    %127 = vector.broadcast %cst_55 : f32 to vector<8x1xf32>
    %128 = arith.mulf %126, %127 : vector<8x1xf32>
    %cst_56 = arith.constant 9.99999997E-7 : f32
    %129 = vector.broadcast %cst_56 : f32 to vector<8x1xf32>
    %130 = arith.addf %128, %129 : vector<8x1xf32>
    %131 = math.rsqrt %130 : vector<8x1xf32>
    %132 = vector.broadcast %131 : vector<8x1xf32> to vector<8x128xf32>
    %133 = arith.mulf %123, %132 : vector<8x128xf32>
    %134 = vector.broadcast %109 : vector<1x128xf32> to vector<8x128xf32>
    %135 = arith.mulf %133, %134 : vector<8x128xf32>
    %136 = vector.broadcast %110 : vector<1x128xf32> to vector<8x128xf32>
    %137 = arith.addf %135, %136 : vector<8x128xf32>
    %c0_57 = arith.constant 0 : index
    %c0_58 = arith.constant 0 : index
    %c0_59 = arith.constant 0 : index
    %138 = vector.load %arg14[%c0_57, %c0_58, %c0_59] : memref<1x8x128xf32, #tpu.memory_space<vmem>>, vector<1x8x128xf32>
    %139 = vector.shape_cast %138 : vector<1x8x128xf32> to vector<8x128xf32>
    %140 = vector.shape_cast %137 : vector<8x128xf32> to vector<1x8x128xf32>
    tpu.vector_store %arg14[%c0_57, %c0_58, %c0_59], %140 {strides = array<i32>} : memref<1x8x128xf32, #tpu.memory_space<vmem>>, vector<1x8x128xf32>,
    return
  }
  func.func @transform_0(%arg0: i32, %arg1: i32) -> (i32, i32, i32) {
    %c0_i32 = arith.constant 0 : i32
    %c0_i32_0 = arith.constant 0 : i32
    return %arg0, %arg1, %c0_i32 : i32, i32, i32
  }
  func.func @transform_1(%arg0: i32, %arg1: i32) -> (i32, i32, i32) {
    %c0_i32 = arith.constant 0 : i32
    %c0_i32_0 = arith.constant 0 : i32
    return %arg0, %arg1, %c0_i32 : i32, i32, i32
  }
  func.func @transform_2(%arg0: i32, %arg1: i32) -> (i32, i32) {
    %c0_i32 = arith.constant 0 : i32
    %c0_i32_0 = arith.constant 0 : i32
    %c0_i32_1 = arith.constant 0 : i32
    return %c0_i32, %c0_i32_0 : i32, i32
  }
  func.func @transform_3(%arg0: i32, %arg1: i32) -> (i32, i32) {
    %c0_i32 = arith.constant 0 : i32
    %c0_i32_0 = arith.constant 0 : i32
    %c0_i32_1 = arith.constant 0 : i32
    return %c0_i32, %c0_i32_0 : i32, i32
  }
  func.func @transform_4(%arg0: i32, %arg1: i32) -> (i32, i32) {
    %c0_i32 = arith.constant 0 : i32
    %c0_i32_0 = arith.constant 0 : i32
    %c0_i32_1 = arith.constant 0 : i32
    return %c0_i32, %c0_i32_0 : i32, i32
  }
  func.func @transform_5(%arg0: i32, %arg1: i32) -> (i32, i32) {
    %c0_i32 = arith.constant 0 : i32
    %c0_i32_0 = arith.constant 0 : i32
    %c0_i32_1 = arith.constant 0 : i32
    return %c0_i32, %c0_i32_0 : i32, i32
  }
  func.func @transform_6(%arg0: i32, %arg1: i32) -> (i32, i32) {
    %c0_i32 = arith.constant 0 : i32
    %c0_i32_0 = arith.constant 0 : i32
    %c0_i32_1 = arith.constant 0 : i32
    return %c0_i32, %c0_i32_0 : i32, i32
  }
  func.func @transform_7(%arg0: i32, %arg1: i32) -> (i32, i32) {
    %c0_i32 = arith.constant 0 : i32
    %c0_i32_0 = arith.constant 0 : i32
    %c0_i32_1 = arith.constant 0 : i32
    return %c0_i32, %c0_i32_0 : i32, i32
  }
  func.func @transform_8(%arg0: i32, %arg1: i32) -> (i32, i32) {
    %c0_i32 = arith.constant 0 : i32
    %c0_i32_0 = arith.constant 0 : i32
    %c0_i32_1 = arith.constant 0 : i32
    return %c0_i32, %c0_i32_0 : i32, i32
  }
  func.func @transform_9(%arg0: i32, %arg1: i32) -> (i32, i32) {
    %c0_i32 = arith.constant 0 : i32
    %c0_i32_0 = arith.constant 0 : i32
    %c0_i32_1 = arith.constant 0 : i32
    return %c0_i32, %c0_i32_0 : i32, i32
  }
  func.func @transform_10(%arg0: i32, %arg1: i32) -> (i32, i32) {
    %c0_i32 = arith.constant 0 : i32
    %c0_i32_0 = arith.constant 0 : i32
    %c0_i32_1 = arith.constant 0 : i32
    return %c0_i32, %c0_i32_0 : i32, i32
  }
  func.func @transform_11(%arg0: i32, %arg1: i32) -> (i32, i32) {
    %c0_i32 = arith.constant 0 : i32
    %c0_i32_0 = arith.constant 0 : i32
    %c0_i32_1 = arith.constant 0 : i32
    return %c0_i32, %c0_i32_0 : i32, i32
  }
  func.func @transform_12(%arg0: i32, %arg1: i32) -> (i32, i32, i32) {
    %c0_i32 = arith.constant 0 : i32
    %c0_i32_0 = arith.constant 0 : i32
    return %arg0, %arg1, %c0_i32 : i32, i32, i32
  }
}

</mosaic_0001>

<llo_original>
// kernel: tpu_custom_call.1
$region0: #{tpu_custom_call.1}
  #allocation0 [shape = 'u32[]', space=smem, size = 0x4, offset = 0x4, fixed_abs, tag = 'smem constant byte address 0x4 - core index']
  #allocation1 [shape = 'u32[144,128]{1,0:T(1,128)}', space=vmem, size = 0x12000, scoped, tag = 'internal scratch']
  %s0 = inlined_call_operand.hbm [shape: f32[8,128], index: 0, kind: input, shape index: {}]
  %s1 = inlined_call_operand.hbm [shape: f32[8,128], index: 1, kind: output, shape index: {}]
  %s2 = sld [smem:[#allocation0]]
  $region18: #{tpu_custom_call.1} parent=0
    _
  %s4 = ssub.s32 1, %s2
  %s5 = scalar_select 0, %s4, %s2
  $region1: #{tpu_custom_call.1} parent=0
    #allocation2 [shape = 'u8[4096]{0}', space=vmem, size = 0x1000, scoped, tag = 'input window, operand 0, single buffered']
    #allocation3 [shape = 's32[1]{0}', space=sflag, size = 0x4, scoped, tag = 'scoped memory for tpu_custom_call.1']
    #allocation4 [shape = 's32[1]{0}', space=sflag, size = 0x4, scoped, tag = 'scoped memory for tpu_custom_call.1']
    #allocation5 [shape = 'u8[4096]{0}', space=vmem, size = 0x1000, scoped, tag = 'output window, operand 0, single buffered']
    %6 = vsyncpa [#allocation3], 0
    %7 = vsyncpa [#allocation4], 0
    // Predicated region
    $region2: #{tpu_custom_call.1} parent=1 // pred_check
      _
    $region3: #{tpu_custom_call.1} parent=1 // pred_check_branch
      %9 = sbr.rel (0) target = $region5
    $region4: #{tpu_custom_call.1} parent=1 // pred_region
      %s11 = ssub.s32 128, 128
      %12 = vsyncadd [#allocation3], %s11
      %s14 = sshll.u32 [#allocation2], 4
      %s15 = int_to_ptr.vmem [resolvable:$true] %s14
      %17 = dma.hbm_to_vmem [thread:$0]  %s0, 128, %s15, [#allocation3]
    $region5: #{tpu_custom_call.1} parent=1 // pred_fallthru
      _
    // Predicated region
    $region6: #{tpu_custom_call.1} parent=1 // pred_check
      _
    $region7: #{tpu_custom_call.1} parent=1 // pred_check_branch
      %19 = sbr.rel (0) target = $region9
    $region8: #{tpu_custom_call.1} parent=1 // pred_region
      %20 = dma.done [#allocation3], 128
    $region9: #{tpu_custom_call.1} parent=1 // pred_fallthru
      _
    %v21 = vld [vmem:[#allocation2] sm:$0xff]
    %v22 = vadd.f32 %v21, 1.0
    %23 = vst [vmem:[#allocation5] sm:$0xff] %v22
    // Predicated region
    $region10: #{tpu_custom_call.1} parent=1 // pred_check
      _
    $region11: #{tpu_custom_call.1} parent=1 // pred_check_branch
      %25 = sbr.rel (0) target = $region13
    $region12: #{tpu_custom_call.1} parent=1 // pred_region
      %s27 = ssub.s32 128, 128
      %28 = vsyncadd [#allocation4], %s27
      %s30 = sshll.u32 [#allocation5], 4
      %s31 = int_to_ptr.vmem [resolvable:$true] %s30
      %33 = dma.vmem_to_hbm [thread:$0]  %s31, 128, %s1, [#allocation4]
    $region13: #{tpu_custom_call.1} parent=1 // pred_fallthru
      _
    // Predicated region
    $region14: #{tpu_custom_call.1} parent=1 // pred_check
      _
    $region15: #{tpu_custom_call.1} parent=1 // pred_check_branch
      %35 = sbr.rel (0) target = $region17
    $region16: #{tpu_custom_call.1} parent=1 // pred_region
      %36 = dma.done [#allocation4], 128
    $region17: #{tpu_custom_call.1} parent=1 // pred_fallthru
      _
    %37 = vsyncpa [#allocation3], 1
    %38 = vsyncpa [#allocation4], 1

// kernel: tpu_custom_call.1
$region0: #{tpu_custom_call.1}
  #allocation0 [shape = 'u32[]', space=smem, size = 0x4, offset = 0x4, fixed_abs, tag = 'smem constant byte address 0x4 - core index']
  #allocation1 [shape = 'u32[144,128]{1,0:T(1,128)}', space=vmem, size = 0x12000, scoped, tag = 'internal scratch']
  %s0 = inlined_call_operand.hbm [shape: f32[2,8,128], index: 0, kind: input, shape index: {}]
  %s1 = inlined_call_operand.hbm [shape: s32[2,8,8], index: 1, kind: input, shape index: {}]
  %s2 = inlined_call_operand.hbm [shape: bf16[128,384], index: 2, kind: input, shape index: {}]
  %s3 = inlined_call_operand.hbm [shape: bf16[128,128], index: 3, kind: input, shape index: {}]
  %s4 = inlined_call_operand.vmem [shape: f32[1,128], index: 4, kind: input, shape index: {}]
  %s5 = inlined_call_operand.vmem [shape: f32[1,128], index: 5, kind: input, shape index: {}]
  %s6 = inlined_call_operand.hbm [shape: bf16[128,128], index: 6, kind: input, shape index: {}]
  %s7 = inlined_call_operand.vmem [shape: f32[1,128], index: 7, kind: input, shape index: {}]
  %s8 = inlined_call_operand.hbm [shape: bf16[128,128], index: 8, kind: input, shape index: {}]
  %s9 = inlined_call_operand.vmem [shape: f32[1,128], index: 9, kind: input, shape index: {}]
  %s10 = inlined_call_operand.vmem [shape: f32[1,128], index: 10, kind: input, shape index: {}]
  %s11 = inlined_call_operand.vmem [shape: f32[1,128], index: 11, kind: input, shape index: {}]
  %s12 = inlined_call_operand.hbm [shape: f32[2,8,128], index: 12, kind: output, shape index: {}]
  %s13 = sld [smem:[#allocation0]]
  $region105: #{tpu_custom_call.1} parent=0
    _
  %s15 = ssub.s32 1, %s13
  %s16 = scalar_select 0, %s15, %s13
  $region1: #{tpu_custom_call.1} parent=0
    #allocation2 [shape = 'u8[8192]{0}', space=vmem, size = 0x2000, scoped, tag = 'input window, operand 0']
    #allocation3 [shape = 's32[2]{0}', space=sflag, size = 0x8, scoped, tag = 'scoped memory for tpu_custom_call.1']
    #allocation4 [shape = 's32[2]{0}', space=sflag, size = 0x8, scoped, tag = 'scoped memory for tpu_custom_call.1']
    #allocation5 [shape = 'u8[8192]{0}', space=vmem, size = 0x2000, scoped, tag = 'input window, operand 1']
    #allocation6 [shape = 's32[2]{0}', space=sflag, size = 0x8, scoped, tag = 'scoped memory for tpu_custom_call.1']
    #allocation7 [shape = 'u8[98304]{0}', space=vmem, size = 0x18000, scoped, tag = 'input window, operand 2, single buffered']
    #allocation8 [shape = 'u8[32768]{0}', space=vmem, size = 0x8000, scoped, tag = 'input window, operand 3, single buffered']
    #allocation9 [shape = 's32[1]{0}', space=sflag, size = 0x4, scoped, tag = 'scoped memory for tpu_custom_call.1']
    #allocation10 [shape = 'u8[32768]{0}', space=vmem, size = 0x8000, scoped, tag = 'input window, operand 6, single buffered']
    #allocation11 [shape = 'u8[32768]{0}', space=vmem, size = 0x8000, scoped, tag = 'input window, operand 8, single buffered']
    #allocation12 [shape = 's32[1]{0}', space=sflag, size = 0x4, scoped, tag = 'scoped memory for tpu_custom_call.1']
    #allocation13 [shape = 'u8[8192]{0}', space=vmem, size = 0x2000, scoped, tag = 'output window, operand 0']
    %17 = vsyncpa [#allocation3], 0
    %s18 = scalar_lea.sflag [#allocation3], 1
    %19 = vsyncpa %s18, 0
    %20 = vsyncpa [#allocation6], 0
    %s21 = scalar_lea.sflag [#allocation6], 1
    %22 = vsyncpa %s21, 0
    %23 = vsyncpa [#allocation9], 0
    %24 = vsyncpa [#allocation12], 0
    %25 = vsyncpa [#allocation4], 0
    %s26 = scalar_lea.sflag [#allocation4], 1
    %27 = vsyncpa %s26, 0
    loop: start=0, step=1, limit=4
    $region2: #{tpu_custom_call.1} parent=1 // loop_pre_header
      _
    $region3: #{tpu_custom_call.1} parent=1 // loop_header
      %s29 = sphi 0, %s33
      %p30 = scmp.ge.s32.totalorder %s29, 4
      %s36 = sphi 0, %s48
      %s37 = sphi 0, %s44
      %s38 = sphi 0, %s36
      %s39 = sphi 0, %s37
      %s40 = sphi 0, %s38
      %s41 = sphi 0, %s39
      %s53 = sphi 0, %s55
      %s56 = sphi 0, %s53
      %s57 = sphi 0, %s56
      %s73 = sphi 0, %s57
      %s81 = sphi 0, %s83
      %s84 = sphi 0, %s81
      %s85 = sphi 0, %s84
      %s101 = sphi 0, %s85
      %s105 = sphi 0, %s105
      %s107 = sphi 0, %s105
      %s108 = sphi 0, %s107
      %s122 = sphi 0, %s108
      %s126 = sphi 0, %s126
      %s128 = sphi 0, %s126
      %s129 = sphi 0, %s128
      %s143 = sphi 0, %s129
      %s147 = sphi 0, %s147
      %s149 = sphi 0, %s147
      %s150 = sphi 0, %s149
      %s164 = sphi 0, %s150
      %s168 = sphi 0, %s168
      %s170 = sphi 0, %s168
      %s171 = sphi 0, %s170
      %s185 = sphi 0, %s171
      %s189 = sphi 0, %s189
      %s191 = sphi 0, %s189
      %s192 = sphi 0, %s191
      %s206 = sphi 0, %s192
      %s210 = sphi 0, %s210
      %s212 = sphi 0, %s210
      %s213 = sphi 0, %s212
      %s227 = sphi 0, %s213
      %s231 = sphi 0, %s231
      %s233 = sphi 0, %s231
      %s234 = sphi 0, %s233
      %s248 = sphi 0, %s234
      %s252 = sphi 0, %s252
      %s254 = sphi 0, %s252
      %s255 = sphi 0, %s254
      %s269 = sphi 0, %s255
      %s273 = sphi 0, %s273
      %s275 = sphi 0, %s273
      %s276 = sphi 0, %s275
      %s290 = sphi 0, %s276
      %s294 = sphi 0, %s294
      %s296 = sphi 0, %s294
      %s297 = sphi 0, %s296
      %s311 = sphi 0, %s297
      %s319 = sphi 0, %s321
      %s322 = sphi 0, %s319
      %s323 = sphi 0, %s322
      %s339 = sphi 0, %s323
    $region4: #{tpu_custom_call.1} parent=1 // loop_header_branch
      %32 = sbr.rel (%p30) target = $region8
    $region5: #{tpu_custom_call.1} parent=1 // loop_body
      %s34 = ssub.s32 %s29, 1
      %s35 = ssub.s32 %s29, 2
      %s42 = sadd.s32 1, %s37
      %p43 = scmp.ge.s32.totalorder %s42, 1
      %s44 = scalar_select %p43, 0, %s42
      %s45 = sadd.s32 1, %s36
      %s46 = scalar_select %p43, %s45, %s36
      %p47 = scmp.ge.s32.totalorder %s46, 2
      %s48 = scalar_select %p47, 0, %s46
      %s49 = ssub.s32 %s36, %s48
      %s50 = ssub.s32 %s37, %s44
      %s51 = sor.u32 %s49, %s50
      %p52 = scmp.eq.s32.totalorder %s51, 0
      %s54 = sadd.s32 %s53, 1
      %s55 = scalar_select %p52, %s53, %s54
      %p58 = pneg %p52
      %p59 = scmp.eq.s32.totalorder %s29, 1
      %p60 = por %p58, %p59
      %p61 = scmp.ne.s32.totalorder %s53, %s56
      %p62 = scmp.eq.s32.totalorder %s29, 0
      %p63 = por %p61, %p62
      %p64 = scmp.ne.s32.totalorder %s53, %s56
      %p65 = scmp.eq.s32.totalorder %s34, 1
      %p66 = por %p64, %p65
      %p67 = scmp.ne.s32.totalorder %s56, %s57
      %p68 = scmp.eq.s32.totalorder %s34, 0
      %p69 = por %p67, %p68
      %p70 = scmp.ne.s32.totalorder %s56, %s57
      %p71 = scmp.eq.s32.totalorder %s35, 1
      %p72 = por %p70, %p71
      %p74 = scmp.ne.s32.totalorder %s57, %s73
      %p75 = scmp.eq.s32.totalorder %s35, 0
      %p76 = por %p74, %p75
      %s77 = ssub.s32 %s36, %s48
      %s78 = ssub.s32 %s37, %s44
      %s79 = sor.u32 %s77, %s78
      %p80 = scmp.eq.s32.totalorder %s79, 0
      %s82 = sadd.s32 %s81, 1
      %s83 = scalar_select %p80, %s81, %s82
      %p86 = pneg %p80
      %p87 = scmp.eq.s32.totalorder %s29, 1
      %p88 = por %p86, %p87
      %p89 = scmp.ne.s32.totalorder %s81, %s84
      %p90 = scmp.eq.s32.totalorder %s29, 0
      %p91 = por %p89, %p90
      %p92 = scmp.ne.s32.totalorder %s81, %s84
      %p93 = scmp.eq.s32.totalorder %s34, 1
      %p94 = por %p92, %p93
      %p95 = scmp.ne.s32.totalorder %s84, %s85
      %p96 = scmp.eq.s32.totalorder %s34, 0
      %p97 = por %p95, %p96
      %p98 = scmp.ne.s32.totalorder %s84, %s85
      %p99 = scmp.eq.s32.totalorder %s35, 1
      %p100 = por %p98, %p99
      %p102 = scmp.ne.s32.totalorder %s85, %s101
      %p103 = scmp.eq.s32.totalorder %s35, 0
      %p104 = por %p102, %p103
      %s106 = sadd.s32 %s105, 1
      %p109 = scmp.eq.s32.totalorder %s29, 1
      %p110 = scmp.ne.s32.totalorder %s105, %s107
      %p111 = scmp.eq.s32.totalorder %s29, 0
      %p112 = por %p110, %p111
      %p113 = scmp.ne.s32.totalorder %s105, %s107
      %p114 = scmp.eq.s32.totalorder %s34, 1
      %p115 = por %p113, %p114
      %p116 = scmp.ne.s32.totalorder %s107, %s108
      %p117 = scmp.eq.s32.totalorder %s34, 0
      %p118 = por %p116, %p117
      %p119 = scmp.ne.s32.totalorder %s107, %s108
      %p120 = scmp.eq.s32.totalorder %s35, 1
      %p121 = por %p119, %p120
      %p123 = scmp.ne.s32.totalorder %s108, %s122
      %p124 = scmp.eq.s32.totalorder %s35, 0
      %p125 = por %p123, %p124
      %s127 = sadd.s32 %s126, 1
      %p130 = scmp.eq.s32.totalorder %s29, 1
      %p131 = scmp.ne.s32.totalorder %s126, %s128
      %p132 = scmp.eq.s32.totalorder %s29, 0
      %p133 = por %p131, %p132
      %p134 = scmp.ne.s32.totalorder %s126, %s128
      %p135 = scmp.eq.s32.totalorder %s34, 1
      %p136 = por %p134, %p135
      %p137 = scmp.ne.s32.totalorder %s128, %s129
      %p138 = scmp.eq.s32.totalorder %s34, 0
      %p139 = por %p137, %p138
      %p140 = scmp.ne.s32.totalorder %s128, %s129
      %p141 = scmp.eq.s32.totalorder %s35, 1
      %p142 = por %p140, %p141
      %p144 = scmp.ne.s32.totalorder %s129, %s143
      %p145 = scmp.eq.s32.totalorder %s35, 0
      %p146 = por %p144, %p145
      %s148 = sadd.s32 %s147, 1
      %p151 = scmp.eq.s32.totalorder %s29, 1
      %p152 = scmp.ne.s32.totalorder %s147, %s149
      %p153 = scmp.eq.s32.totalorder %s29, 0
      %p154 = por %p152, %p153
      %p155 = scmp.ne.s32.totalorder %s147, %s149
      %p156 = scmp.eq.s32.totalorder %s34, 1
      %p157 = por %p155, %p156
      %p158 = scmp.ne.s32.totalorder %s149, %s150
      %p159 = scmp.eq.s32.totalorder %s34, 0
      %p160 = por %p158, %p159
      %p161 = scmp.ne.s32.totalorder %s149, %s150
      %p162 = scmp.eq.s32.totalorder %s35, 1
      %p163 = por %p161, %p162
      %p165 = scmp.ne.s32.totalorder %s150, %s164
      %p166 = scmp.eq.s32.totalorder %s35, 0
      %p167 = por %p165, %p166
      %s169 = sadd.s32 %s168, 1
      %p172 = scmp.eq.s32.totalorder %s29, 1
      %p173 = scmp.ne.s32.totalorder %s168, %s170
      %p174 = scmp.eq.s32.totalorder %s29, 0
      %p175 = por %p173, %p174
      %p176 = scmp.ne.s32.totalorder %s168, %s170
      %p177 = scmp.eq.s32.totalorder %s34, 1
      %p178 = por %p176, %p177
      %p179 = scmp.ne.s32.totalorder %s170, %s171
      %p180 = scmp.eq.s32.totalorder %s34, 0
      %p181 = por %p179, %p180
      %p182 = scmp.ne.s32.totalorder %s170, %s171
      %p183 = scmp.eq.s32.totalorder %s35, 1
      %p184 = por %p182, %p183
      %p186 = scmp.ne.s32.totalorder %s171, %s185
      %p187 = scmp.eq.s32.totalorder %s35, 0
      %p188 = por %p186, %p187
      %s190 = sadd.s32 %s189, 1
      %p193 = scmp.eq.s32.totalorder %s29, 1
      %p194 = scmp.ne.s32.totalorder %s189, %s191
      %p195 = scmp.eq.s32.totalorder %s29, 0
      %p196 = por %p194, %p195
      %p197 = scmp.ne.s32.totalorder %s189, %s191
      %p198 = scmp.eq.s32.totalorder %s34, 1
      %p199 = por %p197, %p198
      %p200 = scmp.ne.s32.totalorder %s191, %s192
      %p201 = scmp.eq.s32.totalorder %s34, 0
      %p202 = por %p200, %p201
      %p203 = scmp.ne.s32.totalorder %s191, %s192
      %p204 = scmp.eq.s32.totalorder %s35, 1
      %p205 = por %p203, %p204
      %p207 = scmp.ne.s32.totalorder %s192, %s206
      %p208 = scmp.eq.s32.totalorder %s35, 0
      %p209 = por %p207, %p208
      %s211 = sadd.s32 %s210, 1
      %p214 = scmp.eq.s32.totalorder %s29, 1
      %p215 = scmp.ne.s32.totalorder %s210, %s212
      %p216 = scmp.eq.s32.totalorder %s29, 0
      %p217 = por %p215, %p216
      %p218 = scmp.ne.s32.totalorder %s210, %s212
      %p219 = scmp.eq.s32.totalorder %s34, 1
      %p220 = por %p218, %p219
      %p221 = scmp.ne.s32.totalorder %s212, %s213
      %p222 = scmp.eq.s32.totalorder %s34, 0
      %p223 = por %p221, %p222
      %p224 = scmp.ne.s32.totalorder %s212, %s213
      %p225 = scmp.eq.s32.totalorder %s35, 1
      %p226 = por %p224, %p225
      %p228 = scmp.ne.s32.totalorder %s213, %s227
      %p229 = scmp.eq.s32.totalorder %s35, 0
      %p230 = por %p228, %p229
      %s232 = sadd.s32 %s231, 1
      %p235 = scmp.eq.s32.totalorder %s29, 1
      %p236 = scmp.ne.s32.totalorder %s231, %s233
      %p237 = scmp.eq.s32.totalorder %s29, 0
      %p238 = por %p236, %p237
      %p239 = scmp.ne.s32.totalorder %s231, %s233
      %p240 = scmp.eq.s32.totalorder %s34, 1
      %p241 = por %p239, %p240
      %p242 = scmp.ne.s32.totalorder %s233, %s234
      %p243 = scmp.eq.s32.totalorder %s34, 0
      %p244 = por %p242, %p243
      %p245 = scmp.ne.s32.totalorder %s233, %s234
      %p246 = scmp.eq.s32.totalorder %s35, 1
      %p247 = por %p245, %p246
      %p249 = scmp.ne.s32.totalorder %s234, %s248
      %p250 = scmp.eq.s32.totalorder %s35, 0
      %p251 = por %p249, %p250
      %s253 = sadd.s32 %s252, 1
      %p256 = scmp.eq.s32.totalorder %s29, 1
      %p257 = scmp.ne.s32.totalorder %s252, %s254
      %p258 = scmp.eq.s32.totalorder %s29, 0
      %p259 = por %p257, %p258
      %p260 = scmp.ne.s32.totalorder %s252, %s254
      %p261 = scmp.eq.s32.totalorder %s34, 1
      %p262 = por %p260, %p261
      %p263 = scmp.ne.s32.totalorder %s254, %s255
      %p264 = scmp.eq.s32.totalorder %s34, 0
      %p265 = por %p263, %p264
      %p266 = scmp.ne.s32.totalorder %s254, %s255
      %p267 = scmp.eq.s32.totalorder %s35, 1
      %p268 = por %p266, %p267
      %p270 = scmp.ne.s32.totalorder %s255, %s269
      %p271 = scmp.eq.s32.totalorder %s35, 0
      %p272 = por %p270, %p271
      %s274 = sadd.s32 %s273, 1
      %p277 = scmp.eq.s32.totalorder %s29, 1
      %p278 = scmp.ne.s32.totalorder %s273, %s275
      %p279 = scmp.eq.s32.totalorder %s29, 0
      %p280 = por %p278, %p279
      %p281 = scmp.ne.s32.totalorder %s273, %s275
      %p282 = scmp.eq.s32.totalorder %s34, 1
      %p283 = por %p281, %p282
      %p284 = scmp.ne.s32.totalorder %s275, %s276
      %p285 = scmp.eq.s32.totalorder %s34, 0
      %p286 = por %p284, %p285
      %p287 = scmp.ne.s32.totalorder %s275, %s276
      %p288 = scmp.eq.s32.totalorder %s35, 1
      %p289 = por %p287, %p288
      %p291 = scmp.ne.s32.totalorder %s276, %s290
      %p292 = scmp.eq.s32.totalorder %s35, 0
      %p293 = por %p291, %p292
      %s295 = sadd.s32 %s294, 1
      %p298 = scmp.eq.s32.totalorder %s29, 1
      %p299 = scmp.ne.s32.totalorder %s294, %s296
      %p300 = scmp.eq.s32.totalorder %s29, 0
      %p301 = por %p299, %p300
      %p302 = scmp.ne.s32.totalorder %s294, %s296
      %p303 = scmp.eq.s32.totalorder %s34, 1
      %p304 = por %p302, %p303
      %p305 = scmp.ne.s32.totalorder %s296, %s297
      %p306 = scmp.eq.s32.totalorder %s34, 0
      %p307 = por %p305, %p306
      %p308 = scmp.ne.s32.totalorder %s296, %s297
      %p309 = scmp.eq.s32.totalorder %s35, 1
      %p310 = por %p308, %p309
      %p312 = scmp.ne.s32.totalorder %s297, %s311
      %p313 = scmp.eq.s32.totalorder %s35, 0
      %p314 = por %p312, %p313
      %s315 = ssub.s32 %s36, %s48
      %s316 = ssub.s32 %s37, %s44
      %s317 = sor.u32 %s315, %s316
      %p318 = scmp.eq.s32.totalorder %s317, 0
      %s320 = sadd.s32 %s319, 1
      %s321 = scalar_select %p318, %s319, %s320
      %p324 = pneg %p318
      %p325 = scmp.eq.s32.totalorder %s29, 1
      %p326 = por %p324, %p325
      %p327 = scmp.ne.s32.totalorder %s319, %s322
      %p328 = scmp.eq.s32.totalorder %s29, 0
      %p329 = por %p327, %p328
      %p330 = scmp.ne.s32.totalorder %s319, %s322
      %p331 = scmp.eq.s32.totalorder %s34, 1
      %p332 = por %p330, %p331
      %p333 = scmp.ne.s32.totalorder %s322, %s323
      %p334 = scmp.eq.s32.totalorder %s34, 0
      %p335 = por %p333, %p334
      %p336 = scmp.ne.s32.totalorder %s322, %s323
      %p337 = scmp.eq.s32.totalorder %s35, 1
      %p338 = por %p336, %p337
      %p340 = scmp.ne.s32.totalorder %s323, %s339
      %p341 = scmp.eq.s32.totalorder %s35, 0
      %p342 = por %p340, %p341
      %p343 = scmp.le.s32.totalorder 1, %s29
      %p344 = scmp.lt.s32.totalorder %s29, 3
      %p345 = pnand %p343, %p344
      %p346 = pneg %p345
      // Predicated region
      $region9: #{tpu_custom_call.1} parent=5 // pred_check
        _
      $region10: #{tpu_custom_call.1} parent=5 // pred_check_branch
        %348 = sbr.rel (%p345) target = $region12
      $region11: #{tpu_custom_call.1} parent=5 // pred_region
        %s349 = ssub.s32 %s29, 1
        // Predicated region
        $region13: #{tpu_custom_call.1} parent=11 // pred_check
          %p350 = pneg %p118
        $region14: #{tpu_custom_call.1} parent=11 // pred_check_branch
          %352 = sbr.rel (%p350) target = $region16
        $region15: #{tpu_custom_call.1} parent=11 // pred_region
          %s354 = ssub.s32 3072, 3072
          %355 = vsyncadd [#allocation6], %s354
          %s356 = sshll.u32 [#allocation7], 4
          %s357 = int_to_ptr.vmem [resolvable:$true] %s356
          %362 = dma.hbm_to_vmem [thread:$0]  %s2, 3072, %s357, [#allocation6], 192, 192, 12
        $region16: #{tpu_custom_call.1} parent=11 // pred_fallthru
          _
        // Predicated region
        $region17: #{tpu_custom_call.1} parent=11 // pred_check
          %p363 = pneg %p139
        $region18: #{tpu_custom_call.1} parent=11 // pred_check_branch
          %365 = sbr.rel (%p363) target = $region20
        $region19: #{tpu_custom_call.1} parent=11 // pred_region
          %s367 = ssub.s32 1024, 1024
          %368 = vsyncadd [#allocation9], %s367
          %s369 = sshll.u32 [#allocation8], 4
          %s370 = int_to_ptr.vmem [resolvable:$true] %s369
          %375 = dma.hbm_to_vmem [thread:$0]  %s3, 1024, %s370, [#allocation9], 64, 64, 4
        $region20: #{tpu_custom_call.1} parent=11 // pred_fallthru
          _
        // Predicated region
        $region21: #{tpu_custom_call.1} parent=11 // pred_check
          %p376 = pneg %p160
        $region22: #{tpu_custom_call.1} parent=11 // pred_check_branch
          %378 = sbr.rel (%p376) target = $region24
        $region23: #{tpu_custom_call.1} parent=11 // pred_region
          _
        $region24: #{tpu_custom_call.1} parent=11 // pred_fallthru
          _
        // Predicated region
        $region25: #{tpu_custom_call.1} parent=11 // pred_check
          %p379 = pneg %p181
        $region26: #{tpu_custom_call.1} parent=11 // pred_check_branch
          %381 = sbr.rel (%p379) target = $region28
        $region27: #{tpu_custom_call.1} parent=11 // pred_region
          _
        $region28: #{tpu_custom_call.1} parent=11 // pred_fallthru
          _
        // Predicated region
        $region29: #{tpu_custom_call.1} parent=11 // pred_check
          %p382 = pneg %p202
        $region30: #{tpu_custom_call.1} parent=11 // pred_check_branch
          %384 = sbr.rel (%p382) target = $region32
        $region31: #{tpu_custom_call.1} parent=11 // pred_region
          %s386 = ssub.s32 1024, 1024
          %387 = vsyncadd [#allocation9], %s386
          %s388 = sshll.u32 [#allocation10], 4
          %s389 = int_to_ptr.vmem [resolvable:$true] %s388
          %394 = dma.hbm_to_vmem [thread:$0]  %s6, 1024, %s389, [#allocation9], 64, 64, 4
        $region32: #{tpu_custom_call.1} parent=11 // pred_fallthru
          _
        // Predicated region
        $region33: #{tpu_custom_call.1} parent=11 // pred_check
          %p395 = pneg %p223
        $region34: #{tpu_custom_call.1} parent=11 // pred_check_branch
          %397 = sbr.rel (%p395) target = $region36
        $region35: #{tpu_custom_call.1} parent=11 // pred_region
          _
        $region36: #{tpu_custom_call.1} parent=11 // pred_fallthru
          _
        // Predicated region
        $region37: #{tpu_custom_call.1} parent=11 // pred_check
          %p398 = pneg %p244
        $region38: #{tpu_custom_call.1} parent=11 // pred_check_branch
          %400 = sbr.rel (%p398) target = $region40
        $region39: #{tpu_custom_call.1} parent=11 // pred_region
          %s402 = ssub.s32 1024, 1024
          %403 = vsyncadd [#allocation12], %s402
          %s404 = sshll.u32 [#allocation11], 4
          %s405 = int_to_ptr.vmem [resolvable:$true] %s404
          %410 = dma.hbm_to_vmem [thread:$0]  %s8, 1024, %s405, [#allocation12], 64, 64, 4
        $region40: #{tpu_custom_call.1} parent=11 // pred_fallthru
          _
        // Predicated region
        $region41: #{tpu_custom_call.1} parent=11 // pred_check
          %p411 = pneg %p265
        $region42: #{tpu_custom_call.1} parent=11 // pred_check_branch
          %413 = sbr.rel (%p411) target = $region44
        $region43: #{tpu_custom_call.1} parent=11 // pred_region
          _
        $region44: #{tpu_custom_call.1} parent=11 // pred_fallthru
          _
        // Predicated region
        $region45: #{tpu_custom_call.1} parent=11 // pred_check
          %p414 = pneg %p286
        $region46: #{tpu_custom_call.1} parent=11 // pred_check_branch
          %416 = sbr.rel (%p414) target = $region48
        $region47: #{tpu_custom_call.1} parent=11 // pred_region
          _
        $region48: #{tpu_custom_call.1} parent=11 // pred_fallthru
          _
        // Predicated region
        $region49: #{tpu_custom_call.1} parent=11 // pred_check
          %p417 = pneg %p307
        $region50: #{tpu_custom_call.1} parent=11 // pred_check_branch
          %419 = sbr.rel (%p417) target = $region52
        $region51: #{tpu_custom_call.1} parent=11 // pred_region
          _
        $region52: #{tpu_custom_call.1} parent=11 // pred_fallthru
          _
      $region12: #{tpu_custom_call.1} parent=5 // pred_fallthru
        _
      %p420 = scmp.lt.s32.totalorder %s29, 2
      // Predicated region
      $region53: #{tpu_custom_call.1} parent=5 // pred_check
        %p421 = pneg %p420
      $region54: #{tpu_custom_call.1} parent=5 // pred_check_branch
        %423 = sbr.rel (%p421) target = $region56
      $region55: #{tpu_custom_call.1} parent=5 // pred_region
        // Predicated region
        $region57: #{tpu_custom_call.1} parent=55 // pred_check
          %p424 = pneg %p63
        $region58: #{tpu_custom_call.1} parent=55 // pred_check_branch
          %426 = sbr.rel (%p424) target = $region60
        $region59: #{tpu_custom_call.1} parent=55 // pred_region
          %s427 = sand.u32 %s53, 1
          %s428 = scalar_lea.sflag [#allocation3], %s427
          %s429 = sand.u32 %s53, 1
          %s430 = smul.addr %s429, 8
          %s431 = scalar_lea.vmem [#allocation2], %s430
          %s433 = ssub.s32 128, 128
          %434 = vsyncadd %s428, %s433
          %s435 = sadd.s32 %s37, %s36
          %s436 = smul.addr %s435, 128
          %s437 = scalar_lea.hbm %s0, %s436
          %s439 = sshll.u32 %s431, 4
          %s440 = int_to_ptr.vmem [resolvable:$true] %s439
          %442 = dma.hbm_to_vmem [thread:$0]  %s437, 128, %s440, %s428
        $region60: #{tpu_custom_call.1} parent=55 // pred_fallthru
          _
        // Predicated region
        $region61: #{tpu_custom_call.1} parent=55 // pred_check
          %p443 = pneg %p91
        $region62: #{tpu_custom_call.1} parent=55 // pred_check_branch
          %445 = sbr.rel (%p443) target = $region64
        $region63: #{tpu_custom_call.1} parent=55 // pred_region
          %s446 = sand.u32 %s29, 1
          %s447 = scalar_lea.sflag [#allocation6], %s446
          %s448 = sand.u32 %s81, 1
          %s449 = smul.addr %s448, 8
          %s450 = scalar_lea.vmem [#allocation5], %s449
          %s452 = ssub.s32 128, 128
          %453 = vsyncadd %s447, %s452
          %s454 = sadd.s32 %s37, %s36
          %s455 = smul.addr %s454, 128
          %s456 = scalar_lea.hbm %s1, %s455
          %s458 = sshll.u32 %s450, 4
          %s459 = int_to_ptr.vmem [resolvable:$true] %s458
          %461 = dma.hbm_to_vmem [thread:$0]  %s456, 128, %s459, %s447
        $region64: #{tpu_custom_call.1} parent=55 // pred_fallthru
          _
      $region56: #{tpu_custom_call.1} parent=5 // pred_fallthru
        _
      %p462 = scmp.le.s32.totalorder 1, %s29
      %p463 = scmp.lt.s32.totalorder %s29, 3
      %p464 = pnand %p462, %p463
      %p465 = pneg %p464
      // Predicated region
      $region65: #{tpu_custom_call.1} parent=5 // pred_check
        _
      $region66: #{tpu_custom_call.1} parent=5 // pred_check_branch
        %467 = sbr.rel (%p464) target = $region68
      $region67: #{tpu_custom_call.1} parent=5 // pred_region
        %s468 = ssub.s32 %s29, 1
        %s469 = sand.u32 %s56, 1
        %s470 = scalar_lea.sflag [#allocation3], %s469
        %s471 = sand.u32 %s56, 1
        %s472 = smul.addr %s471, 8
        %s473 = scalar_lea.vmem [#allocation2], %s472
        // Predicated region
        $region69: #{tpu_custom_call.1} parent=67 // pred_check
          %p474 = pneg %p69
        $region70: #{tpu_custom_call.1} parent=67 // pred_check_branch
          %476 = sbr.rel (%p474) target = $region72
        $region71: #{tpu_custom_call.1} parent=67 // pred_region
          %477 = dma.done %s470, 128
        $region72: #{tpu_custom_call.1} parent=67 // pred_fallthru
          _
        %s478 = sand.u32 %s34, 1
        %s479 = scalar_lea.sflag [#allocation6], %s478
        %s480 = sand.u32 %s84, 1
        %s481 = smul.addr %s480, 8
        %s482 = scalar_lea.vmem [#allocation5], %s481
        // Predicated region
        $region73: #{tpu_custom_call.1} parent=67 // pred_check
          %p483 = pneg %p97
        $region74: #{tpu_custom_call.1} parent=67 // pred_check_branch
          %485 = sbr.rel (%p483) target = $region76
        $region75: #{tpu_custom_call.1} parent=67 // pred_region
          %486 = dma.done %s479, 128
        $region76: #{tpu_custom_call.1} parent=67 // pred_fallthru
          _
        // Predicated region
        $region77: #{tpu_custom_call.1} parent=67 // pred_check
          %p487 = pneg %p118
        $region78: #{tpu_custom_call.1} parent=67 // pred_check_branch
          %489 = sbr.rel (%p487) target = $region80
        $region79: #{tpu_custom_call.1} parent=67 // pred_region
          %490 = dma.done [#allocation6], 3072
        $region80: #{tpu_custom_call.1} parent=67 // pred_fallthru
          _
        // Predicated region
        $region81: #{tpu_custom_call.1} parent=67 // pred_check
          %p491 = pneg %p139
        $region82: #{tpu_custom_call.1} parent=67 // pred_check_branch
          %493 = sbr.rel (%p491) target = $region84
        $region83: #{tpu_custom_call.1} parent=67 // pred_region
          %494 = dma.done [#allocation9], 1024
        $region84: #{tpu_custom_call.1} parent=67 // pred_fallthru
          _
        // Predicated region
        $region85: #{tpu_custom_call.1} parent=67 // pred_check
          %p495 = pneg %p202
        $region86: #{tpu_custom_call.1} parent=67 // pred_check_branch
          %497 = sbr.rel (%p495) target = $region88
        $region87: #{tpu_custom_call.1} parent=67 // pred_region
          %498 = dma.done [#allocation9], 1024
        $region88: #{tpu_custom_call.1} parent=67 // pred_fallthru
          _
        // Predicated region
        $region89: #{tpu_custom_call.1} parent=67 // pred_check
          %p499 = pneg %p244
        $region90: #{tpu_custom_call.1} parent=67 // pred_check_branch
          %501 = sbr.rel (%p499) target = $region92
        $region91: #{tpu_custom_call.1} parent=67 // pred_region
          %502 = dma.done [#allocation12], 1024
        $region92: #{tpu_custom_call.1} parent=67 // pred_fallthru
          _
        %s503 = sand.u32 %s56, 1
        %s504 = scalar_lea.sflag [#allocation3], %s503
        %s505 = sand.u32 %s56, 1
        %s506 = smul.addr %s505, 8
        %s507 = scalar_lea.vmem [#allocation2], %s506
        %p508 = pneg %p69
        %p509 = pneg %p66
        %s510 = sand.u32 %s34, 1
        %s511 = scalar_lea.sflag [#allocation6], %s510
        %s512 = sand.u32 %s84, 1
        %s513 = smul.addr %s512, 8
        %s514 = scalar_lea.vmem [#allocation5], %s513
        %p515 = pneg %p97
        %p516 = pneg %p94
        %p517 = pneg %p118
        %p518 = pneg %p115
        %p519 = pneg %p139
        %p520 = pneg %p136
        %p521 = pneg %p160
        %p522 = pneg %p157
        %p523 = pneg %p181
        %p524 = pneg %p178
        %p525 = pneg %p202
        %p526 = pneg %p199
        %p527 = pneg %p223
        %p528 = pneg %p220
        %p529 = pneg %p244
        %p530 = pneg %p241
        %p531 = pneg %p265
        %p532 = pneg %p262
        %p533 = pneg %p286
        %p534 = pneg %p283
        %p535 = pneg %p307
        %p536 = pneg %p304
        %p537 = pneg %p335
        %p538 = pneg %p332
        %s539 = sand.u32 %s322, 1
        %s540 = scalar_lea.sflag [#allocation4], %s539
        %s541 = sand.u32 %s322, 1
        %s542 = smul.addr %s541, 8
        %s543 = scalar_lea.vmem [#allocation13], %s542
        %v545 = vld [vmem:[%s473] sm:$0xff]
        %v546 = vpack.c.bf16 %v545, %v545
        %v547 = vld [vmem:[#allocation7] sm:$0xff]
        %v548 = vld [vmem:[#allocation7 + $0x8] sm:$0xf]
        %v549 = vld [vmem:[#allocation7 + $0xc] sm:$0xff]
        %v550 = vld [vmem:[#allocation7 + $0x14] sm:$0xf]
        %v551 = vld [vmem:[#allocation7 + $0x18] sm:$0xff]
        %v552 = vld [vmem:[#allocation7 + $0x20] sm:$0xf]
        %v553 = vld [vmem:[#allocation7 + $0x24] sm:$0xff]
        %v554 = vld [vmem:[#allocation7 + $0x2c] sm:$0xf]
        %v555 = vld [vmem:[#allocation7 + $0x30] sm:$0xff]
        %v556 = vld [vmem:[#allocation7 + $0x38] sm:$0xf]
        %v557 = vld [vmem:[#allocation7 + $0x3c] sm:$0xff]
        %v558 = vld [vmem:[#allocation7 + $0x44] sm:$0xf]
        %v559 = vld [vmem:[#allocation7 + $0x48] sm:$0xff]
        %v560 = vld [vmem:[#allocation7 + $0x50] sm:$0xf]
        %v561 = vld [vmem:[#allocation7 + $0x54] sm:$0xff]
        %v562 = vld [vmem:[#allocation7 + $0x5c] sm:$0xf]
        %v563 = vld [vmem:[#allocation7 + $0x60] sm:$0xff]
        %v564 = vld [vmem:[#allocation7 + $0x68] sm:$0xf]
        %v565 = vld [vmem:[#allocation7 + $0x6c] sm:$0xff]
        %v566 = vld [vmem:[#allocation7 + $0x74] sm:$0xf]
        %v567 = vld [vmem:[#allocation7 + $0x78] sm:$0xff]
        %v568 = vld [vmem:[#allocation7 + $0x80] sm:$0xf]
        %v569 = vld [vmem:[#allocation7 + $0x84] sm:$0xff]
        %v570 = vld [vmem:[#allocation7 + $0x8c] sm:$0xf]
        %v571 = vld [vmem:[#allocation7 + $0x90] sm:$0xff]
        %v572 = vld [vmem:[#allocation7 + $0x98] sm:$0xf]
        %v573 = vld [vmem:[#allocation7 + $0x9c] sm:$0xff]
        %v574 = vld [vmem:[#allocation7 + $0xa4] sm:$0xf]
        %v575 = vld [vmem:[#allocation7 + $0xa8] sm:$0xff]
        %v576 = vld [vmem:[#allocation7 + $0xb0] sm:$0xf]
        %v577 = vld [vmem:[#allocation7 + $0xb4] sm:$0xff]
        %v578 = vld [vmem:[#allocation7 + $0xbc] sm:$0xf]
        %v611 = vunpack.c.l.b16 %v547
        %v612 = vunpack.c.h.b16 %v547
        %v613 = vunpack.c.l.b16 %v548
        %v614 = vunpack.c.l.b16 %v549
        %v615 = vunpack.c.h.b16 %v549
        %v616 = vunpack.c.l.b16 %v550
        %v617 = vunpack.c.l.b16 %v551
        %v618 = vunpack.c.h.b16 %v551
        %v619 = vunpack.c.l.b16 %v552
        %v620 = vunpack.c.l.b16 %v553
        %v621 = vunpack.c.h.b16 %v553
        %v622 = vunpack.c.l.b16 %v554
        %v623 = vunpack.c.l.b16 %v555
        %v624 = vunpack.c.h.b16 %v555
        %v625 = vunpack.c.l.b16 %v556
        %v626 = vunpack.c.l.b16 %v557
        %v627 = vunpack.c.h.b16 %v557
        %v628 = vunpack.c.l.b16 %v558
        %v629 = vunpack.c.l.b16 %v559
        %v630 = vunpack.c.h.b16 %v559
        %v631 = vunpack.c.l.b16 %v560
        %v632 = vunpack.c.l.b16 %v561
        %v633 = vunpack.c.h.b16 %v561
        %v634 = vunpack.c.l.b16 %v562
        %v635 = vunpack.c.l.b16 %v563
        %v636 = vunpack.c.h.b16 %v563
        %v637 = vunpack.c.l.b16 %v564
        %v638 = vunpack.c.l.b16 %v565
        %v639 = vunpack.c.h.b16 %v565
        %v640 = vunpack.c.l.b16 %v566
        %v641 = vunpack.c.l.b16 %v567
        %v642 = vunpack.c.h.b16 %v567
        %v643 = vunpack.c.l.b16 %v568
        %v644 = vunpack.c.l.b16 %v569
        %v645 = vunpack.c.h.b16 %v569
        %v646 = vunpack.c.l.b16 %v570
        %v647 = vunpack.c.l.b16 %v571
        %v648 = vunpack.c.h.b16 %v571
        %v649 = vunpack.c.l.b16 %v572
        %v650 = vunpack.c.l.b16 %v573
        %v651 = vunpack.c.h.b16 %v573
        %v652 = vunpack.c.l.b16 %v574
        %v653 = vunpack.c.l.b16 %v575
        %v654 = vunpack.c.h.b16 %v575
        %v655 = vunpack.c.l.b16 %v576
        %v656 = vunpack.c.l.b16 %v577
        %v657 = vunpack.c.h.b16 %v577
        %v658 = vunpack.c.l.b16 %v578
        %v659 = vpack.c.b16 %v614, %v611
        %v660 = vpack.c.b16 %v615, %v612
        %v661 = vpack.c.b16 %v616, %v613
        %v662 = vpack.c.b16 %v620, %v617
        %v663 = vpack.c.b16 %v621, %v618
        %v664 = vpack.c.b16 %v622, %v619
        %v665 = vpack.c.b16 %v626, %v623
        %v666 = vpack.c.b16 %v627, %v624
        %v667 = vpack.c.b16 %v628, %v625
        %v668 = vpack.c.b16 %v632, %v629
        %v669 = vpack.c.b16 %v633, %v630
        %v670 = vpack.c.b16 %v634, %v631
        %v671 = vpack.c.b16 %v638, %v635
        %v672 = vpack.c.b16 %v639, %v636
        %v673 = vpack.c.b16 %v640, %v637
        %v674 = vpack.c.b16 %v644, %v641
        %v675 = vpack.c.b16 %v645, %v642
        %v676 = vpack.c.b16 %v646, %v643
        %v677 = vpack.c.b16 %v650, %v647
        %v678 = vpack.c.b16 %v651, %v648
        %v679 = vpack.c.b16 %v652, %v649
        %v680 = vpack.c.b16 %v656, %v653
        %v681 = vpack.c.b16 %v657, %v654
        %v682 = vpack.c.b16 %v658, %v655
        %707 = vmatprep.subr.bf16.mxu0 %v660
        %708 = vmatpush1.bf16.msra.mxu0 %v659
        %709 = vmatprep.subr.bf16.mxu0 %v663
        %710 = vmatpush1.bf16.msra.mxu0 %v662
        %711 = vmatprep.subr.bf16.mxu0 %v666
        %712 = vmatpush1.bf16.msra.mxu0 %v665
        %713 = vmatprep.subr.bf16.mxu0 %v669
        %714 = vmatpush1.bf16.msra.mxu0 %v668
        %715 = vmatprep.subr.bf16.mxu0 %v672
        %716 = vmatpush1.bf16.msra.mxu0 %v671
        %717 = vmatprep.subr.bf16.mxu0 %v675
        %718 = vmatpush1.bf16.msra.mxu0 %v674
        %719 = vmatprep.subr.bf16.mxu0 %v678
        %720 = vmatpush1.bf16.msra.mxu0 %v677
        %721 = vmatprep.subr.bf16.mxu0 %v681
        %722 = vmatpush1.bf16.msra.mxu0 %v680
        %723 = vmatprep.subr.bf16.mxu0 0
        %724 = vmatpush1.bf16.msra.mxu0 0
        %725 = vmatprep.subr.bf16.mxu0 0
        %726 = vmatpush1.bf16.msra.mxu0 0
        %727 = vmatprep.subr.bf16.mxu0 0
        %728 = vmatpush1.bf16.msra.mxu0 0
        %729 = vmatprep.subr.bf16.mxu0 0
        %730 = vmatpush1.bf16.msra.mxu0 0
        %731 = vmatprep.subr.bf16.mxu0 0
        %732 = vmatpush1.bf16.msra.mxu0 0
        %733 = vmatprep.subr.bf16.mxu0 0
        %734 = vmatpush1.bf16.msra.mxu0 0
        %735 = vmatprep.subr.bf16.mxu0 0
        %736 = vmatpush1.bf16.msra.mxu0 0
        %737 = vmatprep.subr.bf16.mxu0 0
        %738 = vmatpush1.bf16.msra.mxu0 0
        %739 = vmatprep.mubr.bf16.mxu0 0
        %740 = vmatmul.mubr.bf16.gmra.mrb[0].mxu0 %v546
        %v741 = vpop.f32.mrb[0].mxu0
        %v742 = vadd.f32 0.0, %v741
        %v743 = vpop.f32.mrb[0].mxu0
        %v744 = vadd.f32 0.0, %v743
        %v745 = vpop.f32.mrb[0].mxu0
        %v746 = vpop.f32.mrb[0].mxu0
        %747 = vdwg.mxu0
        %748 = vmatprep.subr.bf16.mxu0 0
        %749 = vmatpush1.bf16.msra.mxu0 %v661
        %750 = vmatprep.subr.bf16.mxu0 0
        %751 = vmatpush1.bf16.msra.mxu0 %v664
        %752 = vmatprep.subr.bf16.mxu0 0
        %753 = vmatpush1.bf16.msra.mxu0 %v667
        %754 = vmatprep.subr.bf16.mxu0 0
        %755 = vmatpush1.bf16.msra.mxu0 %v670
        %756 = vmatprep.subr.bf16.mxu0 0
        %757 = vmatpush1.bf16.msra.mxu0 %v673
        %758 = vmatprep.subr.bf16.mxu0 0
        %759 = vmatpush1.bf16.msra.mxu0 %v676
        %760 = vmatprep.subr.bf16.mxu0 0
        %761 = vmatpush1.bf16.msra.mxu0 %v679
        %762 = vmatprep.subr.bf16.mxu0 0
        %763 = vmatpush1.bf16.msra.mxu0 %v682
        %764 = vmatprep.subr.bf16.mxu0 0
        %765 = vmatpush1.bf16.msra.mxu0 0
        %766 = vmatprep.subr.bf16.mxu0 0
        %767 = vmatpush1.bf16.msra.mxu0 0
        %768 = vmatprep.subr.bf16.mxu0 0
        %769 = vmatpush1.bf16.msra.mxu0 0
        %770 = vmatprep.subr.bf16.mxu0 0
        %771 = vmatpush1.bf16.msra.mxu0 0
        %772 = vmatprep.subr.bf16.mxu0 0
        %773 = vmatpush1.bf16.msra.mxu0 0
        %774 = vmatprep.subr.bf16.mxu0 0
        %775 = vmatpush1.bf16.msra.mxu0 0
        %776 = vmatprep.subr.bf16.mxu0 0
        %777 = vmatpush1.bf16.msra.mxu0 0
        %778 = vmatprep.subr.bf16.mxu0 0
        %779 = vmatpush1.bf16.msra.mxu0 0
        %780 = vmatprep.mubr.bf16.mxu0 0
        %781 = vmatmul.mubr.bf16.gmra.mrb[0].mxu0 %v546
        %v782 = vpop.f32.mrb[0].mxu0
        %v783 = vadd.f32 0.0, %v782
        %v784 = vpop.f32.mrb[0].mxu0
        %v785 = vpop.f32.mrb[0].mxu0
        %v786 = vpop.f32.mrb[0].mxu0
        %787 = vdwg.mxu0
        %v788 = vld [vmem:[%s482] sm:$0xff]
        %vm789 = vcmp.ne.s32.totalorder %v788, 0
        %v790 = vsel %vm789, -1e+09, 0.0
        %v791 = vmul.f32 %v742, 0.35355338
        %v792 = vpack.c.bf16 %v791, %v791
        %v793 = vpack.c.bf16 %v744, %v744
        %v794 = vpack.c.bf16 %v783, %v783
        %vm795 = vcmask 64512
        %v797 = vsel %vm795, %v792, 0
        %v800 = vsel %vm795, %v793, 0
        %802 = vmatprep.subr.bf16.mxu0 0
        %803 = vmatpush1.bf16.xpose.msra.mxu0 %v800
        %804 = vmatprep.subr.bf16.mxu0 0
        %805 = vmatpush1.bf16.xpose.msra.mxu0 0
        %806 = vmatprep.subr.bf16.mxu0 0
        %807 = vmatpush1.bf16.xpose.msra.mxu0 0
        %808 = vmatprep.subr.bf16.mxu0 0
        %809 = vmatpush1.bf16.xpose.msra.mxu0 0
        %810 = vmatprep.subr.bf16.mxu0 0
        %811 = vmatpush1.bf16.xpose.msra.mxu0 0
        %812 = vmatprep.subr.bf16.mxu0 0
        %813 = vmatpush1.bf16.xpose.msra.mxu0 0
        %814 = vmatprep.subr.bf16.mxu0 0
        %815 = vmatpush1.bf16.xpose.msra.mxu0 0
        %816 = vmatprep.subr.bf16.mxu0 0
        %817 = vmatpush1.bf16.xpose.msra.mxu0 0
        %818 = vmatprep.subr.bf16.mxu0 0
        %819 = vmatpush1.bf16.xpose.msra.mxu0 0
        %820 = vmatprep.subr.bf16.mxu0 0
        %821 = vmatpush1.bf16.xpose.msra.mxu0 0
        %822 = vmatprep.subr.bf16.mxu0 0
        %823 = vmatpush1.bf16.xpose.msra.mxu0 0
        %824 = vmatprep.subr.bf16.mxu0 0
        %825 = vmatpush1.bf16.xpose.msra.mxu0 0
        %826 = vmatprep.subr.bf16.mxu0 0
        %827 = vmatpush1.bf16.xpose.msra.mxu0 0
        %828 = vmatprep.subr.bf16.mxu0 0
        %829 = vmatpush1.bf16.xpose.msra.mxu0 0
        %830 = vmatprep.subr.bf16.mxu0 0
        %831 = vmatpush1.bf16.xpose.msra.mxu0 0
        %832 = vmatprep.subr.bf16.mxu0 0
        %833 = vmatpush1.bf16.xpose.msra.mxu0 0
        %834 = vmatprep.mubr.bf16.mxu0 0
        %835 = vmatmul.mubr.bf16.gmra.mrb[0].mxu0 %v797
        %v836 = vpop.f32.mrb[0].mxu0
        %v837 = vadd.f32 %v790, %v836
        %v838 = vpop.f32.mrb[0].mxu0
        %v839 = vpop.f32.mrb[0].mxu0
        %v840 = vpop.f32.mrb[0].mxu0
        %841 = vdwg.mxu0
        %v842 = vsel %vm795, %v837, -inf
        %843 = vmax.xlane.f32.xlu0 %v842
        %v844 = vpop.xlane.xlu0 %843
        %v845 = vsub.f32 %v837, %v844
        %v846 = vmul.f32 %v845, 1.442695
        %v847 = vpow.pop %v846
        %v848 = vsel %vm795, %v847, 0.0
        %849 = vadd.xlane.f32.xlu0 %v848
        %v850 = vpop.xlane.xlu0 %849
        %v851 = vrcp.pop %v850
        %v852 = vmul.f32 %v847, %v851
        %v853 = vpack.c.bf16 %v852, %v852
        %v855 = vsel %vm795, %v853, 0
        %vm857 = vcmask 1043456
        %v859 = vsel %vm857, %v794, 0
        %861 = vmatprep.subr.bf16.mxu0 0
        %862 = vmatpush1.bf16.msra.mxu0 %v859
        %863 = vmatprep.subr.bf16.mxu0 0
        %864 = vmatpush1.bf16.msra.mxu0 0
        %865 = vmatprep.subr.bf16.mxu0 0
        %866 = vmatpush1.bf16.msra.mxu0 0
        %867 = vmatprep.subr.bf16.mxu0 0
        %868 = vmatpush1.bf16.msra.mxu0 0
        %869 = vmatprep.subr.bf16.mxu0 0
        %870 = vmatpush1.bf16.msra.mxu0 0
        %871 = vmatprep.subr.bf16.mxu0 0
        %872 = vmatpush1.bf16.msra.mxu0 0
        %873 = vmatprep.subr.bf16.mxu0 0
        %874 = vmatpush1.bf16.msra.mxu0 0
        %875 = vmatprep.subr.bf16.mxu0 0
        %876 = vmatpush1.bf16.msra.mxu0 0
        %877 = vmatprep.subr.bf16.mxu0 0
        %878 = vmatpush1.bf16.msra.mxu0 0
        %879 = vmatprep.subr.bf16.mxu0 0
        %880 = vmatpush1.bf16.msra.mxu0 0
        %881 = vmatprep.subr.bf16.mxu0 0
        %882 = vmatpush1.bf16.msra.mxu0 0
        %883 = vmatprep.subr.bf16.mxu0 0
        %884 = vmatpush1.bf16.msra.mxu0 0
        %885 = vmatprep.subr.bf16.mxu0 0
        %886 = vmatpush1.bf16.msra.mxu0 0
        %887 = vmatprep.subr.bf16.mxu0 0
        %888 = vmatpush1.bf16.msra.mxu0 0
        %889 = vmatprep.subr.bf16.mxu0 0
        %890 = vmatpush1.bf16.msra.mxu0 0
        %891 = vmatprep.subr.bf16.mxu0 0
        %892 = vmatpush1.bf16.msra.mxu0 0
        %893 = vmatprep.mubr.bf16.mxu0 0
        %894 = vmatmul.mubr.bf16.gmra.mrb[0].mxu0 %v855
        %v895 = vpop.f32.mrb[0].mxu0
        %v896 = vadd.f32 0.0, %v895
        %v897 = vpop.f32.mrb[0].mxu0
        %v898 = vpop.f32.mrb[0].mxu0
        %v899 = vpop.f32.mrb[0].mxu0
        %900 = vdwg.mxu0
        %902 = vrot.lane.b32.xlu0 %v792, 120
        %v903 = vpop.permute.xlu0 %902
        %905 = vrot.lane.b32.xlu0 %v793, 120
        %v906 = vpop.permute.xlu0 %905
        %v908 = vsel %vm795, %v903, 0
        %v911 = vsel %vm795, %v906, 0
        %913 = vmatprep.subr.bf16.mxu0 0
        %914 = vmatpush1.bf16.xpose.msra.mxu0 %v911
        %915 = vmatprep.subr.bf16.mxu0 0
        %916 = vmatpush1.bf16.xpose.msra.mxu0 0
        %917 = vmatprep.subr.bf16.mxu0 0
        %918 = vmatpush1.bf16.xpose.msra.mxu0 0
        %919 = vmatprep.subr.bf16.mxu0 0
        %920 = vmatpush1.bf16.xpose.msra.mxu0 0
        %921 = vmatprep.subr.bf16.mxu0 0
        %922 = vmatpush1.bf16.xpose.msra.mxu0 0
        %923 = vmatprep.subr.bf16.mxu0 0
        %924 = vmatpush1.bf16.xpose.msra.mxu0 0
        %925 = vmatprep.subr.bf16.mxu0 0
        %926 = vmatpush1.bf16.xpose.msra.mxu0 0
        %927 = vmatprep.subr.bf16.mxu0 0
        %928 = vmatpush1.bf16.xpose.msra.mxu0 0
        %929 = vmatprep.subr.bf16.mxu0 0
        %930 = vmatpush1.bf16.xpose.msra.mxu0 0
        %931 = vmatprep.subr.bf16.mxu0 0
        %932 = vmatpush1.bf16.xpose.msra.mxu0 0
        %933 = vmatprep.subr.bf16.mxu0 0
        %934 = vmatpush1.bf16.xpose.msra.mxu0 0
        %935 = vmatprep.subr.bf16.mxu0 0
        %936 = vmatpush1.bf16.xpose.msra.mxu0 0
        %937 = vmatprep.subr.bf16.mxu0 0
        %938 = vmatpush1.bf16.xpose.msra.mxu0 0
        %939 = vmatprep.subr.bf16.mxu0 0
        %940 = vmatpush1.bf16.xpose.msra.mxu0 0
        %941 = vmatprep.subr.bf16.mxu0 0
        %942 = vmatpush1.bf16.xpose.msra.mxu0 0
        %943 = vmatprep.subr.bf16.mxu0 0
        %944 = vmatpush1.bf16.xpose.msra.mxu0 0
        %945 = vmatprep.mubr.bf16.mxu0 0
        %946 = vmatmul.mubr.bf16.gmra.mrb[0].mxu0 %v908
        %v947 = vpop.f32.mrb[0].mxu0
        %v948 = vadd.f32 %v790, %v947
        %v949 = vpop.f32.mrb[0].mxu0
        %v950 = vpop.f32.mrb[0].mxu0
        %v951 = vpop.f32.mrb[0].mxu0
        %952 = vdwg.mxu0
        %v953 = vsel %vm795, %v948, -inf
        %954 = vmax.xlane.f32.xlu0 %v953
        %v955 = vpop.xlane.xlu0 %954
        %v956 = vsub.f32 %v948, %v955
        %v957 = vmul.f32 %v956, 1.442695
        %v958 = vpow.pop %v957
        %v959 = vsel %vm795, %v958, 0.0
        %960 = vadd.xlane.f32.xlu0 %v959
        %v961 = vpop.xlane.xlu0 %960
        %v962 = vrcp.pop %v961
        %v963 = vmul.f32 %v958, %v962
        %v964 = vpack.c.bf16 %v963, %v963
        %966 = vrot.lane.b32.xlu0 %v794, 120
        %v967 = vpop.permute.xlu0 %966
        %v969 = vsel %vm795, %v964, 0
        %v972 = vsel %vm857, %v967, 0
        %974 = vmatprep.subr.bf16.mxu0 0
        %975 = vmatpush1.bf16.msra.mxu0 %v972
        %976 = vmatprep.subr.bf16.mxu0 0
        %977 = vmatpush1.bf16.msra.mxu0 0
        %978 = vmatprep.subr.bf16.mxu0 0
        %979 = vmatpush1.bf16.msra.mxu0 0
        %980 = vmatprep.subr.bf16.mxu0 0
        %981 = vmatpush1.bf16.msra.mxu0 0
        %982 = vmatprep.subr.bf16.mxu0 0
        %983 = vmatpush1.bf16.msra.mxu0 0
        %984 = vmatprep.subr.bf16.mxu0 0
        %985 = vmatpush1.bf16.msra.mxu0 0
        %986 = vmatprep.subr.bf16.mxu0 0
        %987 = vmatpush1.bf16.msra.mxu0 0
        %988 = vmatprep.subr.bf16.mxu0 0
        %989 = vmatpush1.bf16.msra.mxu0 0
        %990 = vmatprep.subr.bf16.mxu0 0
        %991 = vmatpush1.bf16.msra.mxu0 0
        %992 = vmatprep.subr.bf16.mxu0 0
        %993 = vmatpush1.bf16.msra.mxu0 0
        %994 = vmatprep.subr.bf16.mxu0 0
        %995 = vmatpush1.bf16.msra.mxu0 0
        %996 = vmatprep.subr.bf16.mxu0 0
        %997 = vmatpush1.bf16.msra.mxu0 0
        %998 = vmatprep.subr.bf16.mxu0 0
        %999 = vmatpush1.bf16.msra.mxu0 0
        %1000 = vmatprep.subr.bf16.mxu0 0
        %1001 = vmatpush1.bf16.msra.mxu0 0
        %1002 = vmatprep.subr.bf16.mxu0 0
        %1003 = vmatpush1.bf16.msra.mxu0 0
        %1004 = vmatprep.subr.bf16.mxu0 0
        %1005 = vmatpush1.bf16.msra.mxu0 0
        %1006 = vmatprep.mubr.bf16.mxu0 0
        %1007 = vmatmul.mubr.bf16.gmra.mrb[0].mxu0 %v969
        %v1008 = vpop.f32.mrb[0].mxu0
        %v1009 = vadd.f32 0.0, %v1008
        %v1010 = vpop.f32.mrb[0].mxu0
        %v1011 = vpop.f32.mrb[0].mxu0
        %v1012 = vpop.f32.mrb[0].mxu0
        %1013 = vdwg.mxu0
        %1015 = vrot.lane.b32.xlu0 %v1009, 8
        %v1016 = vpop.permute.xlu0 %1015
        %v1018 = vsel %vm795, %v896, %v1016
        %vm1019 = vcmask 130048
        %v1020 = vsel %vm1019, %v1018, 0.0
        %v1021 = vpack.c.bf16 %v1020, %v1020
        %v1022 = vld [vmem:[#allocation8] sm:$0xf]
        %v1023 = vld [vmem:[#allocation8 + $0x4] sm:$0xf]
        %v1024 = vld [vmem:[#allocation8 + $0x8] sm:$0xf]
        %v1025 = vld [vmem:[#allocation8 + $0xc] sm:$0xf]
        %v1026 = vld [vmem:[#allocation8 + $0x10] sm:$0xf]
        %v1027 = vld [vmem:[#allocation8 + $0x14] sm:$0xf]
        %v1028 = vld [vmem:[#allocation8 + $0x18] sm:$0xf]
        %v1029 = vld [vmem:[#allocation8 + $0x1c] sm:$0xf]
        %v1030 = vld [vmem:[#allocation8 + $0x20] sm:$0xf]
        %v1031 = vld [vmem:[#allocation8 + $0x24] sm:$0xf]
        %v1032 = vld [vmem:[#allocation8 + $0x28] sm:$0xf]
        %v1033 = vld [vmem:[#allocation8 + $0x2c] sm:$0xf]
        %v1034 = vld [vmem:[#allocation8 + $0x30] sm:$0xf]
        %v1035 = vld [vmem:[#allocation8 + $0x34] sm:$0xf]
        %v1036 = vld [vmem:[#allocation8 + $0x38] sm:$0xf]
        %v1037 = vld [vmem:[#allocation8 + $0x3c] sm:$0xf]
        %v1054 = vunpack.c.l.b16 %v1022
        %v1055 = vunpack.c.l.b16 %v1023
        %v1056 = vunpack.c.l.b16 %v1024
        %v1057 = vunpack.c.l.b16 %v1025
        %v1058 = vunpack.c.l.b16 %v1026
        %v1059 = vunpack.c.l.b16 %v1027
        %v1060 = vunpack.c.l.b16 %v1028
        %v1061 = vunpack.c.l.b16 %v1029
        %v1062 = vunpack.c.l.b16 %v1030
        %v1063 = vunpack.c.l.b16 %v1031
        %v1064 = vunpack.c.l.b16 %v1032
        %v1065 = vunpack.c.l.b16 %v1033
        %v1066 = vunpack.c.l.b16 %v1034
        %v1067 = vunpack.c.l.b16 %v1035
        %v1068 = vunpack.c.l.b16 %v1036
        %v1069 = vunpack.c.l.b16 %v1037
        %v1070 = vpack.c.b16 %v1055, %v1054
        %v1071 = vpack.c.b16 %v1057, %v1056
        %v1072 = vpack.c.b16 %v1059, %v1058
        %v1073 = vpack.c.b16 %v1061, %v1060
        %v1074 = vpack.c.b16 %v1063, %v1062
        %v1075 = vpack.c.b16 %v1065, %v1064
        %v1076 = vpack.c.b16 %v1067, %v1066
        %v1077 = vpack.c.b16 %v1069, %v1068
        %1086 = vmatprep.subr.bf16.mxu0 0
        %1087 = vmatpush1.bf16.msra.mxu0 %v1070
        %1088 = vmatprep.subr.bf16.mxu0 0
        %1089 = vmatpush1.bf16.msra.mxu0 %v1071
        %1090 = vmatprep.subr.bf16.mxu0 0
        %1091 = vmatpush1.bf16.msra.mxu0 %v1072
        %1092 = vmatprep.subr.bf16.mxu0 0
        %1093 = vmatpush1.bf16.msra.mxu0 %v1073
        %1094 = vmatprep.subr.bf16.mxu0 0
        %1095 = vmatpush1.bf16.msra.mxu0 %v1074
        %1096 = vmatprep.subr.bf16.mxu0 0
        %1097 = vmatpush1.bf16.msra.mxu0 %v1075
        %1098 = vmatprep.subr.bf16.mxu0 0
        %1099 = vmatpush1.bf16.msra.mxu0 %v1076
        %1100 = vmatprep.subr.bf16.mxu0 0
        %1101 = vmatpush1.bf16.msra.mxu0 %v1077
        %1102 = vmatprep.subr.bf16.mxu0 0
        %1103 = vmatpush1.bf16.msra.mxu0 0
        %1104 = vmatprep.subr.bf16.mxu0 0
        %1105 = vmatpush1.bf16.msra.mxu0 0
        %1106 = vmatprep.subr.bf16.mxu0 0
        %1107 = vmatpush1.bf16.msra.mxu0 0
        %1108 = vmatprep.subr.bf16.mxu0 0
        %1109 = vmatpush1.bf16.msra.mxu0 0
        %1110 = vmatprep.subr.bf16.mxu0 0
        %1111 = vmatpush1.bf16.msra.mxu0 0
        %1112 = vmatprep.subr.bf16.mxu0 0
        %1113 = vmatpush1.bf16.msra.mxu0 0
        %1114 = vmatprep.subr.bf16.mxu0 0
        %1115 = vmatpush1.bf16.msra.mxu0 0
        %1116 = vmatprep.subr.bf16.mxu0 0
        %1117 = vmatpush1.bf16.msra.mxu0 0
        %1118 = vmatprep.mubr.bf16.mxu0 0
        %1119 = vmatmul.mubr.bf16.gmra.mrb[0].mxu0 %v1021
        %v1120 = vpop.f32.mrb[0].mxu0
        %v1121 = vadd.f32 %v545, %v1120
        %v1122 = vpop.f32.mrb[0].mxu0
        %v1123 = vpop.f32.mrb[0].mxu0
        %v1124 = vpop.f32.mrb[0].mxu0
        %1125 = vdwg.mxu0
        %v1126 = vld [vmem:[%s4] sm:$0x1]
        %v1127 = vld [vmem:[%s5] sm:$0x1]
        %v1128 = vlaneseq
        %v1129 = vand.u32 %v1128, 127
        %vm1130 = vcmp.lt.s32.totalorder %v1129, 32
        %v1131 = vsel %vm1130, %v1121, 0.0
        %1132 = vadd.xlane.f32.xlu0 %v1131
        %v1133 = vpop.xlane.xlu0 %1132
        %v1134 = vmul.f32 %v1133, 0.03125
        %v1135 = vsub.f32 %v1121, %v1134
        %v1136 = vsel %vm1130, %v1135, 0.0
        %v1137 = vmul.f32 %v1136, %v1136
        %1138 = vadd.xlane.f32.xlu0 %v1137
        %v1139 = vpop.xlane.xlu0 %1138
        %v1140 = vmul.f32 %v1139, 0.03125
        %v1141 = vadd.f32 %v1140, 1e-06
        %v1142 = vrsqrt.pop %v1141
        %v1143 = vmul.f32 %v1136, %v1142
        %v1145 = vlaneseq
        %v1146 = vshrl.u32 %v1145, 7
        %v1147 = vsub.s32 0, %v1146
        %v1148 = vrot.slane %v1126, %v1147
        %v1150 = vmul.f32 %v1143, %v1148
        %v1152 = vlaneseq
        %v1153 = vshrl.u32 %v1152, 7
        %v1154 = vsub.s32 0, %v1153
        %v1155 = vrot.slane %v1127, %v1154
        %v1157 = vadd.f32 %v1150, %v1155
        %v1158 = vpack.c.bf16 %v1157, %v1157
        %v1159 = vld [vmem:[#allocation10] sm:$0xf]
        %v1160 = vld [vmem:[#allocation10 + $0x4] sm:$0xf]
        %v1161 = vld [vmem:[#allocation10 + $0x8] sm:$0xf]
        %v1162 = vld [vmem:[#allocation10 + $0xc] sm:$0xf]
        %v1163 = vld [vmem:[#allocation10 + $0x10] sm:$0xf]
        %v1164 = vld [vmem:[#allocation10 + $0x14] sm:$0xf]
        %v1165 = vld [vmem:[#allocation10 + $0x18] sm:$0xf]
        %v1166 = vld [vmem:[#allocation10 + $0x1c] sm:$0xf]
        %v1167 = vld [vmem:[#allocation10 + $0x20] sm:$0xf]
        %v1168 = vld [vmem:[#allocation10 + $0x24] sm:$0xf]
        %v1169 = vld [vmem:[#allocation10 + $0x28] sm:$0xf]
        %v1170 = vld [vmem:[#allocation10 + $0x2c] sm:$0xf]
        %v1171 = vld [vmem:[#allocation10 + $0x30] sm:$0xf]
        %v1172 = vld [vmem:[#allocation10 + $0x34] sm:$0xf]
        %v1173 = vld [vmem:[#allocation10 + $0x38] sm:$0xf]
        %v1174 = vld [vmem:[#allocation10 + $0x3c] sm:$0xf]
        %v1175 = vld [vmem:[%s7] sm:$0x1]
        %v1177 = vlaneseq
        %v1178 = vshrl.u32 %v1177, 7
        %v1179 = vsub.s32 0, %v1178
        %v1180 = vrot.slane %v1175, %v1179
        %v1198 = vunpack.c.l.b16 %v1159
        %v1199 = vunpack.c.l.b16 %v1160
        %v1200 = vunpack.c.l.b16 %v1161
        %v1201 = vunpack.c.l.b16 %v1162
        %v1202 = vunpack.c.l.b16 %v1163
        %v1203 = vunpack.c.l.b16 %v1164
        %v1204 = vunpack.c.l.b16 %v1165
        %v1205 = vunpack.c.l.b16 %v1166
        %v1206 = vunpack.c.l.b16 %v1167
        %v1207 = vunpack.c.l.b16 %v1168
        %v1208 = vunpack.c.l.b16 %v1169
        %v1209 = vunpack.c.l.b16 %v1170
        %v1210 = vunpack.c.l.b16 %v1171
        %v1211 = vunpack.c.l.b16 %v1172
        %v1212 = vunpack.c.l.b16 %v1173
        %v1213 = vunpack.c.l.b16 %v1174
        %v1214 = vpack.c.b16 %v1199, %v1198
        %v1215 = vpack.c.b16 %v1201, %v1200
        %v1216 = vpack.c.b16 %v1203, %v1202
        %v1217 = vpack.c.b16 %v1205, %v1204
        %v1218 = vpack.c.b16 %v1207, %v1206
        %v1219 = vpack.c.b16 %v1209, %v1208
        %v1220 = vpack.c.b16 %v1211, %v1210
        %v1221 = vpack.c.b16 %v1213, %v1212
        %1230 = vmatprep.subr.bf16.mxu0 0
        %1231 = vmatpush1.bf16.msra.mxu0 %v1214
        %1232 = vmatprep.subr.bf16.mxu0 0
        %1233 = vmatpush1.bf16.msra.mxu0 %v1215
        %1234 = vmatprep.subr.bf16.mxu0 0
        %1235 = vmatpush1.bf16.msra.mxu0 %v1216
        %1236 = vmatprep.subr.bf16.mxu0 0
        %1237 = vmatpush1.bf16.msra.mxu0 %v1217
        %1238 = vmatprep.subr.bf16.mxu0 0
        %1239 = vmatpush1.bf16.msra.mxu0 %v1218
        %1240 = vmatprep.subr.bf16.mxu0 0
        %1241 = vmatpush1.bf16.msra.mxu0 %v1219
        %1242 = vmatprep.subr.bf16.mxu0 0
        %1243 = vmatpush1.bf16.msra.mxu0 %v1220
        %1244 = vmatprep.subr.bf16.mxu0 0
        %1245 = vmatpush1.bf16.msra.mxu0 %v1221
        %1246 = vmatprep.subr.bf16.mxu0 0
        %1247 = vmatpush1.bf16.msra.mxu0 0
        %1248 = vmatprep.subr.bf16.mxu0 0
        %1249 = vmatpush1.bf16.msra.mxu0 0
        %1250 = vmatprep.subr.bf16.mxu0 0
        %1251 = vmatpush1.bf16.msra.mxu0 0
        %1252 = vmatprep.subr.bf16.mxu0 0
        %1253 = vmatpush1.bf16.msra.mxu0 0
        %1254 = vmatprep.subr.bf16.mxu0 0
        %1255 = vmatpush1.bf16.msra.mxu0 0
        %1256 = vmatprep.subr.bf16.mxu0 0
        %1257 = vmatpush1.bf16.msra.mxu0 0
        %1258 = vmatprep.subr.bf16.mxu0 0
        %1259 = vmatpush1.bf16.msra.mxu0 0
        %1260 = vmatprep.subr.bf16.mxu0 0
        %1261 = vmatpush1.bf16.msra.mxu0 0
        %1262 = vmatprep.mubr.bf16.mxu0 0
        %1263 = vmatmul.mubr.bf16.gmra.mrb[0].mxu0 %v1158
        %v1264 = vpop.f32.mrb[0].mxu0
        %v1265 = vadd.f32 %v1180, %v1264
        %v1266 = vpop.f32.mrb[0].mxu0
        %v1267 = vpop.f32.mrb[0].mxu0
        %v1268 = vpop.f32.mrb[0].mxu0
        %1269 = vdwg.mxu0
        %v1270 = vmax.f32 %v1265, 0.0
        %v1271 = vpack.c.bf16 %v1270, %v1270
        %v1272 = vld [vmem:[#allocation11] sm:$0xf]
        %v1273 = vld [vmem:[#allocation11 + $0x4] sm:$0xf]
        %v1274 = vld [vmem:[#allocation11 + $0x8] sm:$0xf]
        %v1275 = vld [vmem:[#allocation11 + $0xc] sm:$0xf]
        %v1276 = vld [vmem:[#allocation11 + $0x10] sm:$0xf]
        %v1277 = vld [vmem:[#allocation11 + $0x14] sm:$0xf]
        %v1278 = vld [vmem:[#allocation11 + $0x18] sm:$0xf]
        %v1279 = vld [vmem:[#allocation11 + $0x1c] sm:$0xf]
        %v1280 = vld [vmem:[#allocation11 + $0x20] sm:$0xf]
        %v1281 = vld [vmem:[#allocation11 + $0x24] sm:$0xf]
        %v1282 = vld [vmem:[#allocation11 + $0x28] sm:$0xf]
        %v1283 = vld [vmem:[#allocation11 + $0x2c] sm:$0xf]
        %v1284 = vld [vmem:[#allocation11 + $0x30] sm:$0xf]
        %v1285 = vld [vmem:[#allocation11 + $0x34] sm:$0xf]
        %v1286 = vld [vmem:[#allocation11 + $0x38] sm:$0xf]
        %v1287 = vld [vmem:[#allocation11 + $0x3c] sm:$0xf]
        %v1288 = vld [vmem:[%s9] sm:$0x1]
        %v1290 = vlaneseq
        %v1291 = vshrl.u32 %v1290, 7
        %v1292 = vsub.s32 0, %v1291
        %v1293 = vrot.slane %v1288, %v1292
        %v1311 = vunpack.c.l.b16 %v1272
        %v1312 = vunpack.c.l.b16 %v1273
        %v1313 = vunpack.c.l.b16 %v1274
        %v1314 = vunpack.c.l.b16 %v1275
        %v1315 = vunpack.c.l.b16 %v1276
        %v1316 = vunpack.c.l.b16 %v1277
        %v1317 = vunpack.c.l.b16 %v1278
        %v1318 = vunpack.c.l.b16 %v1279
        %v1319 = vunpack.c.l.b16 %v1280
        %v1320 = vunpack.c.l.b16 %v1281
        %v1321 = vunpack.c.l.b16 %v1282
        %v1322 = vunpack.c.l.b16 %v1283
        %v1323 = vunpack.c.l.b16 %v1284
        %v1324 = vunpack.c.l.b16 %v1285
        %v1325 = vunpack.c.l.b16 %v1286
        %v1326 = vunpack.c.l.b16 %v1287
        %v1327 = vpack.c.b16 %v1312, %v1311
        %v1328 = vpack.c.b16 %v1314, %v1313
        %v1329 = vpack.c.b16 %v1316, %v1315
        %v1330 = vpack.c.b16 %v1318, %v1317
        %v1331 = vpack.c.b16 %v1320, %v1319
        %v1332 = vpack.c.b16 %v1322, %v1321
        %v1333 = vpack.c.b16 %v1324, %v1323
        %v1334 = vpack.c.b16 %v1326, %v1325
        %1343 = vmatprep.subr.bf16.mxu0 0
        %1344 = vmatpush1.bf16.msra.mxu0 %v1327
        %1345 = vmatprep.subr.bf16.mxu0 0
        %1346 = vmatpush1.bf16.msra.mxu0 %v1328
        %1347 = vmatprep.subr.bf16.mxu0 0
        %1348 = vmatpush1.bf16.msra.mxu0 %v1329
        %1349 = vmatprep.subr.bf16.mxu0 0
        %1350 = vmatpush1.bf16.msra.mxu0 %v1330
        %1351 = vmatprep.subr.bf16.mxu0 0
        %1352 = vmatpush1.bf16.msra.mxu0 %v1331
        %1353 = vmatprep.subr.bf16.mxu0 0
        %1354 = vmatpush1.bf16.msra.mxu0 %v1332
        %1355 = vmatprep.subr.bf16.mxu0 0
        %1356 = vmatpush1.bf16.msra.mxu0 %v1333
        %1357 = vmatprep.subr.bf16.mxu0 0
        %1358 = vmatpush1.bf16.msra.mxu0 %v1334
        %1359 = vmatprep.subr.bf16.mxu0 0
        %1360 = vmatpush1.bf16.msra.mxu0 0
        %1361 = vmatprep.subr.bf16.mxu0 0
        %1362 = vmatpush1.bf16.msra.mxu0 0
        %1363 = vmatprep.subr.bf16.mxu0 0
        %1364 = vmatpush1.bf16.msra.mxu0 0
        %1365 = vmatprep.subr.bf16.mxu0 0
        %1366 = vmatpush1.bf16.msra.mxu0 0
        %1367 = vmatprep.subr.bf16.mxu0 0
        %1368 = vmatpush1.bf16.msra.mxu0 0
        %1369 = vmatprep.subr.bf16.mxu0 0
        %1370 = vmatpush1.bf16.msra.mxu0 0
        %1371 = vmatprep.subr.bf16.mxu0 0
        %1372 = vmatpush1.bf16.msra.mxu0 0
        %1373 = vmatprep.subr.bf16.mxu0 0
        %1374 = vmatpush1.bf16.msra.mxu0 0
        %1375 = vmatprep.mubr.bf16.mxu0 0
        %1376 = vmatmul.mubr.bf16.gmra.mrb[0].mxu0 %v1271
        %v1377 = vpop.f32.mrb[0].mxu0
        %v1378 = vadd.f32 %v1293, %v1377
        %v1379 = vpop.f32.mrb[0].mxu0
        %v1380 = vpop.f32.mrb[0].mxu0
        %v1381 = vpop.f32.mrb[0].mxu0
        %1382 = vdwg.mxu0
        %v1383 = vadd.f32 %v1378, %v1157
        %v1384 = vld [vmem:[%s10] sm:$0x1]
        %v1385 = vld [vmem:[%s11] sm:$0x1]
        %v1386 = vsel %vm1130, %v1383, 0.0
        %1387 = vadd.xlane.f32.xlu0 %v1386
        %v1388 = vpop.xlane.xlu0 %1387
        %v1389 = vmul.f32 %v1388, 0.03125
        %v1390 = vsub.f32 %v1383, %v1389
        %v1391 = vsel %vm1130, %v1390, 0.0
        %v1392 = vmul.f32 %v1391, %v1391
        %1393 = vadd.xlane.f32.xlu0 %v1392
        %v1394 = vpop.xlane.xlu0 %1393
        %v1395 = vmul.f32 %v1394, 0.03125
        %v1396 = vadd.f32 %v1395, 1e-06
        %v1397 = vrsqrt.pop %v1396
        %v1398 = vmul.f32 %v1391, %v1397
        %v1400 = vlaneseq
        %v1401 = vshrl.u32 %v1400, 7
        %v1402 = vsub.s32 0, %v1401
        %v1403 = vrot.slane %v1384, %v1402
        %v1405 = vmul.f32 %v1398, %v1403
        %v1407 = vlaneseq
        %v1408 = vshrl.u32 %v1407, 7
        %v1409 = vsub.s32 0, %v1408
        %v1410 = vrot.slane %v1385, %v1409
        %v1412 = vadd.f32 %v1405, %v1410
        %1413 = vst [vmem:[%s543] sm:$0xff] %v1412
        %s1414 = sand.u32 %s322, 1
        %s1415 = scalar_lea.sflag [#allocation4], %s1414
        %s1416 = sand.u32 %s322, 1
        %s1417 = smul.addr %s1416, 8
        %s1418 = scalar_lea.vmem [#allocation13], %s1417
        // Predicated region
        $region93: #{tpu_custom_call.1} parent=67 // pred_check
          %p1419 = pneg %p332
        $region94: #{tpu_custom_call.1} parent=67 // pred_check_branch
          %1421 = sbr.rel (%p1419) target = $region96
        $region95: #{tpu_custom_call.1} parent=67 // pred_region
          %s1423 = ssub.s32 128, 128
          %1424 = vsyncadd %s1415, %s1423
          %s1425 = sadd.s32 %s39, %s38
          %s1426 = smul.addr %s1425, 128
          %s1427 = scalar_lea.hbm %s12, %s1426
          %s1429 = sshll.u32 %s1418, 4
          %s1430 = int_to_ptr.vmem [resolvable:$true] %s1429
          %1432 = dma.vmem_to_hbm [thread:$0]  %s1430, 128, %s1427, %s1415
        $region96: #{tpu_custom_call.1} parent=67 // pred_fallthru
          _
      $region68: #{tpu_custom_call.1} parent=5 // pred_fallthru
        _
      %p1433 = scmp.le.s32.totalorder 2, %s29
      // Predicated region
      $region97: #{tpu_custom_call.1} parent=5 // pred_check
        %p1434 = pneg %p1433
      $region98: #{tpu_custom_call.1} parent=5 // pred_check_branch
        %1436 = sbr.rel (%p1434) target = $region100
      $region99: #{tpu_custom_call.1} parent=5 // pred_region
        %s1437 = ssub.s32 %s29, 2
        // Predicated region
        $region101: #{tpu_custom_call.1} parent=99 // pred_check
          %p1438 = pneg %p338
        $region102: #{tpu_custom_call.1} parent=99 // pred_check_branch
          %1440 = sbr.rel (%p1438) target = $region104
        $region103: #{tpu_custom_call.1} parent=99 // pred_region
          %s1441 = sand.u32 %s323, 1
          %s1442 = scalar_lea.sflag [#allocation4], %s1441
          %s1443 = sand.u32 %s323, 1
          %s1444 = smul.addr %s1443, 8
          %s1445 = scalar_lea.vmem [#allocation13], %s1444
          %1446 = dma.done %s1442, 128
        $region104: #{tpu_custom_call.1} parent=99 // pred_fallthru
          _
      $region100: #{tpu_custom_call.1} parent=5 // pred_fallthru
        _
    $region6: #{tpu_custom_call.1} parent=1 // loop_footer
      %s33 = sadd.s32 1, %s29
    $region7: #{tpu_custom_call.1} parent=1 // loop_footer_branch
      %28 = sbr.rel target = $region3
    $region8: #{tpu_custom_call.1} parent=1 // loop_exit
      _
    %1447 = vsyncpa [#allocation3], 1
    %s1448 = scalar_lea.sflag [#allocation3], 1
    %1449 = vsyncpa %s1448, 1
    %1450 = vsyncpa [#allocation6], 1
    %s1451 = scalar_lea.sflag [#allocation6], 1
    %1452 = vsyncpa %s1451, 1
    %1453 = vsyncpa [#allocation9], 1
    %1454 = vsyncpa [#allocation12], 1
    %1455 = vsyncpa [#allocation4], 1
    %s1456 = scalar_lea.sflag [#allocation4], 1
    %1457 = vsyncpa %s1456, 1

</llo_original>
